<compile_context>
chip_gen: v5e
topology: v5e:2x2
jax: 0.10.0
libtpu: 0.0.40
codegen_flags: <defaults>
</compile_context>

<pallas_src>
import functools

import jax
import jax.numpy as jnp
from jax.experimental import pallas as pl
from jax.experimental.pallas import tpu as pltpu


# ------------------------------ Pallas kernel ------------------------------

def convt_bn_relu_kernel(x_ref, w_ref, shift_ref, o_ref, xp_ref,
                         *, H, W, Cin, Cout):
    """Fused ConvTranspose2d(4,2,1) + BatchNorm(eval, folded) + ReLU.

    x_ref     : (1, H, W, Cin)               input block (one batch element)
    w_ref     : (2, 2, 3, Cin, 2*Cout)       grouped weights [rh, da, b]
    shift_ref : (1, 2*Cout)                  BN shift, tiled over rw
    o_ref     : (1, H, 2, W, 2*Cout)         output; (h, rh, w, (rw, c)) layout
    xp_ref    : (H+2, W+2, Cin) VMEM scratch zero-padded input (halo)
    """
    # Build the zero-padded input in VMEM (no padded copy in HBM).
    xp_ref[...] = jnp.zeros((H + 2, W + 2, Cin), jnp.float32)
    xp_ref[1:H + 1, 1:W + 1, :] = x_ref[0].astype(jnp.float32)

    shift = shift_ref[...].astype(jnp.float32)            # (1, 2*Cout)

    for rh in range(2):                                   # static unroll (2)
        acc = jnp.zeros((H * W, 2 * Cout), jnp.float32)
        for da in range(2):                               # static unroll (2)
            a = rh + da
            for b in range(3):                            # static unroll (3)
                patch = xp_ref[a:a + H, b:b + W, :].reshape(H * W, Cin)
                acc = acc + jnp.dot(patch, w_ref[rh, da, b],
                                    preferred_element_type=jnp.float32)
        y = jnp.maximum(acc + shift, 0.0)                 # BN shift + ReLU
        o_ref[0, :, rh, :, :] = y.reshape(H, W, 2 * Cout).astype(o_ref.dtype)


# ---------------------------- pallas_call wrapper ----------------------------

def _convt_bn_relu(x_nhwc, w_grouped, shift2):
    N, H, W, Cin = x_nhwc.shape
    Cout2 = w_grouped.shape[-1]                            # 2 * Cout
    Cout = Cout2 // 2

    out = pl.pallas_call(
        functools.partial(convt_bn_relu_kernel, H=H, W=W, Cin=Cin, Cout=Cout),
        out_shape=jax.ShapeDtypeStruct((N, H, 2, W, Cout2), jnp.float32),
        grid=(N,),
        in_specs=[
            pl.BlockSpec((1, H, W, Cin), lambda n: (n, 0, 0, 0)),
            pl.BlockSpec((2, 2, 3, Cin, Cout2), lambda n: (0, 0, 0, 0, 0)),
            pl.BlockSpec((1, Cout2), lambda n: (0, 0)),
        ],
        out_specs=pl.BlockSpec((1, H, 2, W, Cout2), lambda n: (n, 0, 0, 0, 0)),
        scratch_shapes=[pltpu.VMEM((H + 2, W + 2, Cin), jnp.float32)],
        compiler_params=pltpu.CompilerParams(
            dimension_semantics=("parallel",)),
    )(x_nhwc, w_grouped, shift2)

    # (N, H, 2, W, 2, Cout) -> (N, 2H, 2W, Cout): pure (free) reshape.
    return out.reshape(N, 2 * H, 2 * W, Cout)


# ------------------------------ forward glue ------------------------------

def unet_decompress_forward(x_nchw, params):
    x = jnp.transpose(x_nchw, (0, 2, 3, 1)).astype(jnp.float32)   # -> NHWC
    y = _convt_bn_relu(x, params['wg'], params['shift2'])         # (N,2H,2W,Co)
    # TODO(synk): nn.Dropout(0.13) training-mode randomness not modeled
    # (eval/identity semantics).
    return jnp.transpose(y, (0, 3, 1, 2))                         # -> NCHW


# --------------------------- parameter construction ---------------------------

def build_params(w, gamma, beta, running_mean, running_var, eps=1e-5):
    """Fold BN (eval mode) into the transposed-conv weights and group taps.

    w : (Cin, Cout, 4, 4)  PyTorch ConvTranspose2d weight (no bias).
    Output sub-pixel (rh, rw): out[2i+rh, 2j+rw] receives, for da, db in {0,1},
      x_padded[i + rh + da, j + rw + db] * W[:, :, (3-rh)-2*da, (3-rw)-2*db].
    Grouped weight wg[rh, da, b][:, rw*Cout:(rw+1)*Cout] holds that tap for
    b = rw + db (zero where db not in {0,1}).
    """
    Cin, Cout = w.shape[0], w.shape[1]
    scale = gamma / jnp.sqrt(running_var + eps)            # (Cout,)
    shift = beta - running_mean * scale                    # (Cout,)
    ws = w * scale[None, :, None, None]                    # BN scale folded

    wg = jnp.zeros((2, 2, 3, Cin, 2 * Cout), jnp.float32)
    for rh in range(2):
        for da in range(2):
            kh = (3 - rh) - 2 * da
            for b in range(3):
                for rw in range(2):
                    db = b - rw
                    if db < 0 or db > 1:
                        continue
                    kw = (3 - rw) - 2 * db
                    wg = wg.at[rh, da, b, :,
                               rw * Cout:(rw + 1) * Cout].set(ws[:, :, kh, kw])

    shift2 = jnp.concatenate([shift, shift]).reshape(1, 2 * Cout)
    return dict(wg=wg, shift2=shift2)
    # TODO(synk): training-mode BatchNorm (batch statistics) not modeled;
    # eval-mode running statistics are folded into scale/shift.


# ------------------------------ pure-JAX reference ------------------------------

def reference_forward(x_nchw, w, gamma, beta, running_mean, running_var,
                      eps=1e-5):
    # ConvTranspose2d(k=4, s=2, p=1) == conv(dilate(x, 2), flip(W)^T, pad=2).
    wf = w[:, :, ::-1, ::-1]
    w_oihw = jnp.transpose(wf, (1, 0, 2, 3))               # (Cout, Cin, 4, 4)
    y = jax.lax.conv_general_dilated(
        x_nchw, w_oihw, window_strides=(1, 1), padding=[(2, 2), (2, 2)],
        lhs_dilation=(2, 2), rhs_dilation=(1, 1),
        dimension_numbers=('NCHW', 'OIHW', 'NCHW'),
        precision=jax.lax.Precision.HIGHEST)
    scale = gamma / jnp.sqrt(running_var + eps)
    shift = beta - running_mean * scale
    y = y * scale[None, :, None, None] + shift[None, :, None, None]
    return jnp.maximum(y, 0.0)


if __name__ == "__main__":
    key = jax.random.PRNGKey(0)
    kx, kw, kg, kb, km, kv = jax.random.split(key, 6)

    N, Cin, H, W = 2, 16, 8, 8
    Cout = 32

    x = jax.random.normal(kx, (N, Cin, H, W), jnp.float32)        # NCHW
    w = 0.1 * jax.random.normal(kw, (Cin, Cout, 4, 4), jnp.float32)
    gamma = 1.0 + 0.1 * jax.random.normal(kg, (Cout,), jnp.float32)
    beta = 0.1 * jax.random.normal(kb, (Cout,), jnp.float32)
    running_mean = 0.1 * jax.random.normal(km, (Cout,), jnp.float32)
    running_var = 0.5 + jax.random.uniform(kv, (Cout,), jnp.float32)

    params = build_params(w, gamma, beta, running_mean, running_var)

    fwd = jax.jit(lambda xx: unet_decompress_forward(xx, params))
    out = jax.block_until_ready(fwd(x))

    assert out.shape == (N, Cout, 2 * H, 2 * W), out.shape
    assert bool(jnp.all(jnp.isfinite(out)))

    ref = reference_forward(x, w, gamma, beta, running_mean, running_var)
    max_err = float(jnp.max(jnp.abs(out - ref)))
    assert jnp.allclose(out, ref, atol=2e-2, rtol=2e-2), max_err

    print("KERNEL_OK")
</pallas_src>

<mosaic_0001>
module attributes {stable_mosaic.version = 11 : i64} {
  func.func @convt_bn_relu_kernel(%arg0: i32, %arg1: memref<1x8x8x16xf32, #tpu.memory_space<vmem>>, %arg2: memref<2x2x3x16x64xf32, #tpu.memory_space<vmem>>, %arg3: memref<1x64xf32, #tpu.memory_space<vmem>>, %arg4: memref<1x8x2x8x64xf32, #tpu.memory_space<vmem>>, %arg5: memref<10x10x16xf32, #tpu.memory_space<vmem>>) attributes {dimension_semantics = [#tpu.dimension_semantics<parallel>], iteration_bounds = array<i64: 2>, scalar_prefetch = 0 : i64, scratch_operands = 1 : i64, tpu.core_type = #tpu.core_type<tc>, window_params = [{transform_indices = @transform_0, window_bounds = array<i64: 1, 8, 8, 16>}, {pipeline_mode = #tpu.pipeline_mode<synchronous>, transform_indices = @transform_1, window_bounds = array<i64: 2, 2, 3, 16, 64>}, {pipeline_mode = #tpu.pipeline_mode<synchronous>, transform_indices = @transform_2, window_bounds = array<i64: 1, 64>}, {transform_indices = @transform_3, window_bounds = array<i64: 1, 8, 2, 8, 64>}]} {
    %cst = arith.constant 0.000000e+00 : f32
    %0 = vector.broadcast %cst : f32 to vector<10x10x16xf32>
    %c0 = arith.constant 0 : index
    %c0_0 = arith.constant 0 : index
    %c0_1 = arith.constant 0 : index
    %1 = vector.load %arg5[%c0, %c0_0, %c0_1] : memref<10x10x16xf32, #tpu.memory_space<vmem>>, vector<10x10x16xf32>
    tpu.vector_store %arg5[%c0, %c0_0, %c0_1], %0 {strides = array<i32>} : memref<10x10x16xf32, #tpu.memory_space<vmem>>, vector<10x10x16xf32>,
    %c0_2 = arith.constant 0 : index
    %c0_3 = arith.constant 0 : index
    %c0_4 = arith.constant 0 : index
    %c0_5 = arith.constant 0 : index
    %2 = vector.load %arg1[%c0_2, %c0_3, %c0_4, %c0_5] : memref<1x8x8x16xf32, #tpu.memory_space<vmem>>, vector<1x8x8x16xf32>
    %3 = vector.shape_cast %2 : vector<1x8x8x16xf32> to vector<8x8x16xf32>
    %c1 = arith.constant 1 : index
    %c1_6 = arith.constant 1 : index
    %c0_7 = arith.constant 0 : index
    %4 = vector.load %arg5[%c1, %c1_6, %c0_7] : memref<10x10x16xf32, #tpu.memory_space<vmem>>, vector<8x8x16xf32>
    tpu.vector_store %arg5[%c1, %c1_6, %c0_7], %3 {strides = array<i32>} : memref<10x10x16xf32, #tpu.memory_space<vmem>>, vector<8x8x16xf32>,
    %c0_8 = arith.constant 0 : index
    %c0_9 = arith.constant 0 : index
    %5 = vector.load %arg3[%c0_8, %c0_9] : memref<1x64xf32, #tpu.memory_space<vmem>>, vector<1x64xf32>
    %cst_10 = arith.constant 0.000000e+00 : f32
    %6 = vector.broadcast %cst_10 : f32 to vector<64x64xf32>
    %c0_11 = arith.constant 0 : index
    %c0_12 = arith.constant 0 : index
    %c0_13 = arith.constant 0 : index
    %7 = vector.load %arg5[%c0_11, %c0_12, %c0_13] : memref<10x10x16xf32, #tpu.memory_space<vmem>>, vector<8x8x16xf32>
    %8 = vector.shape_cast %7 : vector<8x8x16xf32> to vector<64x16xf32>
    %c0_14 = arith.constant 0 : index
    %c0_15 = arith.constant 0 : index
    %c0_16 = arith.constant 0 : index
    %c0_17 = arith.constant 0 : index
    %c0_18 = arith.constant 0 : index
    %9 = vector.load %arg2[%c0_14, %c0_15, %c0_16, %c0_17, %c0_18] : memref<2x2x3x16x64xf32, #tpu.memory_space<vmem>>, vector<1x1x1x16x64xf32>
    %10 = vector.shape_cast %9 : vector<1x1x1x16x64xf32> to vector<16x64xf32>
    %cst_19 = arith.constant dense<0.000000e+00> : vector<64x64xf32>
    %11 = tpu.matmul %8, %10, %cst_19 {dimension_numbers = #tpu.dot_dimension_numbers<[1], [0], [0], [1], [0, 0, 1, 1], [], []>} : vector<64x16xf32>, vector<16x64xf32>, vector<64x64xf32> -> vector<64x64xf32>
    %12 = arith.addf %6, %11 : vector<64x64xf32>
    %c0_20 = arith.constant 0 : index
    %c1_21 = arith.constant 1 : index
    %c0_22 = arith.constant 0 : index
    %13 = vector.load %arg5[%c0_20, %c1_21, %c0_22] : memref<10x10x16xf32, #tpu.memory_space<vmem>>, vector<8x8x16xf32>
    %14 = vector.shape_cast %13 : vector<8x8x16xf32> to vector<64x16xf32>
    %c0_23 = arith.constant 0 : index
    %c0_24 = arith.constant 0 : index
    %c1_25 = arith.constant 1 : index
    %c0_26 = arith.constant 0 : index
    %c0_27 = arith.constant 0 : index
    %15 = vector.load %arg2[%c0_23, %c0_24, %c1_25, %c0_26, %c0_27] : memref<2x2x3x16x64xf32, #tpu.memory_space<vmem>>, vector<1x1x1x16x64xf32>
    %16 = vector.shape_cast %15 : vector<1x1x1x16x64xf32> to vector<16x64xf32>
    %cst_28 = arith.constant dense<0.000000e+00> : vector<64x64xf32>
    %17 = tpu.matmul %14, %16, %cst_28 {dimension_numbers = #tpu.dot_dimension_numbers<[1], [0], [0], [1], [0, 0, 1, 1], [], []>} : vector<64x16xf32>, vector<16x64xf32>, vector<64x64xf32> -> vector<64x64xf32>
    %18 = arith.addf %12, %17 : vector<64x64xf32>
    %c0_29 = arith.constant 0 : index
    %c2 = arith.constant 2 : index
    %c0_30 = arith.constant 0 : index
    %19 = vector.load %arg5[%c0_29, %c2, %c0_30] : memref<10x10x16xf32, #tpu.memory_space<vmem>>, vector<8x8x16xf32>
    %20 = vector.shape_cast %19 : vector<8x8x16xf32> to vector<64x16xf32>
    %c0_31 = arith.constant 0 : index
    %c0_32 = arith.constant 0 : index
    %c2_33 = arith.constant 2 : index
    %c0_34 = arith.constant 0 : index
    %c0_35 = arith.constant 0 : index
    %21 = vector.load %arg2[%c0_31, %c0_32, %c2_33, %c0_34, %c0_35] : memref<2x2x3x16x64xf32, #tpu.memory_space<vmem>>, vector<1x1x1x16x64xf32>
    %22 = vector.shape_cast %21 : vector<1x1x1x16x64xf32> to vector<16x64xf32>
    %cst_36 = arith.constant dense<0.000000e+00> : vector<64x64xf32>
    %23 = tpu.matmul %20, %22, %cst_36 {dimension_numbers = #tpu.dot_dimension_numbers<[1], [0], [0], [1], [0, 0, 1, 1], [], []>} : vector<64x16xf32>, vector<16x64xf32>, vector<64x64xf32> -> vector<64x64xf32>
    %24 = arith.addf %18, %23 : vector<64x64xf32>
    %c1_37 = arith.constant 1 : index
    %c0_38 = arith.constant 0 : index
    %c0_39 = arith.constant 0 : index
    %25 = vector.load %arg5[%c1_37, %c0_38, %c0_39] : memref<10x10x16xf32, #tpu.memory_space<vmem>>, vector<8x8x16xf32>
    %26 = vector.shape_cast %25 : vector<8x8x16xf32> to vector<64x16xf32>
    %c0_40 = arith.constant 0 : index
    %c1_41 = arith.constant 1 : index
    %c0_42 = arith.constant 0 : index
    %c0_43 = arith.constant 0 : index
    %c0_44 = arith.constant 0 : index
    %27 = vector.load %arg2[%c0_40, %c1_41, %c0_42, %c0_43, %c0_44] : memref<2x2x3x16x64xf32, #tpu.memory_space<vmem>>, vector<1x1x1x16x64xf32>
    %28 = vector.shape_cast %27 : vector<1x1x1x16x64xf32> to vector<16x64xf32>
    %cst_45 = arith.constant dense<0.000000e+00> : vector<64x64xf32>
    %29 = tpu.matmul %26, %28, %cst_45 {dimension_numbers = #tpu.dot_dimension_numbers<[1], [0], [0], [1], [0, 0, 1, 1], [], []>} : vector<64x16xf32>, vector<16x64xf32>, vector<64x64xf32> -> vector<64x64xf32>
    %30 = arith.addf %24, %29 : vector<64x64xf32>
    %c1_46 = arith.constant 1 : index
    %c1_47 = arith.constant 1 : index
    %c0_48 = arith.constant 0 : index
    %31 = vector.load %arg5[%c1_46, %c1_47, %c0_48] : memref<10x10x16xf32, #tpu.memory_space<vmem>>, vector<8x8x16xf32>
    %32 = vector.shape_cast %31 : vector<8x8x16xf32> to vector<64x16xf32>
    %c0_49 = arith.constant 0 : index
    %c1_50 = arith.constant 1 : index
    %c1_51 = arith.constant 1 : index
    %c0_52 = arith.constant 0 : index
    %c0_53 = arith.constant 0 : index
    %33 = vector.load %arg2[%c0_49, %c1_50, %c1_51, %c0_52, %c0_53] : memref<2x2x3x16x64xf32, #tpu.memory_space<vmem>>, vector<1x1x1x16x64xf32>
    %34 = vector.shape_cast %33 : vector<1x1x1x16x64xf32> to vector<16x64xf32>
    %cst_54 = arith.constant dense<0.000000e+00> : vector<64x64xf32>
    %35 = tpu.matmul %32, %34, %cst_54 {dimension_numbers = #tpu.dot_dimension_numbers<[1], [0], [0], [1], [0, 0, 1, 1], [], []>} : vector<64x16xf32>, vector<16x64xf32>, vector<64x64xf32> -> vector<64x64xf32>
    %36 = arith.addf %30, %35 : vector<64x64xf32>
    %c1_55 = arith.constant 1 : index
    %c2_56 = arith.constant 2 : index
    %c0_57 = arith.constant 0 : index
    %37 = vector.load %arg5[%c1_55, %c2_56, %c0_57] : memref<10x10x16xf32, #tpu.memory_space<vmem>>, vector<8x8x16xf32>
    %38 = vector.shape_cast %37 : vector<8x8x16xf32> to vector<64x16xf32>
    %c0_58 = arith.constant 0 : index
    %c1_59 = arith.constant 1 : index
    %c2_60 = arith.constant 2 : index
    %c0_61 = arith.constant 0 : index
    %c0_62 = arith.constant 0 : index
    %39 = vector.load %arg2[%c0_58, %c1_59, %c2_60, %c0_61, %c0_62] : memref<2x2x3x16x64xf32, #tpu.memory_space<vmem>>, vector<1x1x1x16x64xf32>
    %40 = vector.shape_cast %39 : vector<1x1x1x16x64xf32> to vector<16x64xf32>
    %cst_63 = arith.constant dense<0.000000e+00> : vector<64x64xf32>
    %41 = tpu.matmul %38, %40, %cst_63 {dimension_numbers = #tpu.dot_dimension_numbers<[1], [0], [0], [1], [0, 0, 1, 1], [], []>} : vector<64x16xf32>, vector<16x64xf32>, vector<64x64xf32> -> vector<64x64xf32>
    %42 = arith.addf %36, %41 : vector<64x64xf32>
    %43 = vector.broadcast %5 : vector<1x64xf32> to vector<64x64xf32>
    %44 = arith.addf %42, %43 : vector<64x64xf32>
    %cst_64 = arith.constant 0.000000e+00 : f32
    %45 = vector.broadcast %cst_64 : f32 to vector<64x64xf32>
    %46 = arith.maximumf %44, %45 : vector<64x64xf32>
    %47 = vector.shape_cast %46 : vector<64x64xf32> to vector<8x8x64xf32>
    %c0_65 = arith.constant 0 : index
    %c0_66 = arith.constant 0 : index
    %c0_67 = arith.constant 0 : index
    %c0_68 = arith.constant 0 : index
    %c0_69 = arith.constant 0 : index
    %48 = vector.load %arg4[%c0_65, %c0_66, %c0_67, %c0_68, %c0_69] : memref<1x8x2x8x64xf32, #tpu.memory_space<vmem>>, vector<1x8x1x8x64xf32>
    %49 = vector.shape_cast %48 : vector<1x8x1x8x64xf32> to vector<8x8x64xf32>
    %50 = vector.shape_cast %47 : vector<8x8x64xf32> to vector<1x8x1x8x64xf32>
    tpu.vector_store %arg4[%c0_65, %c0_66, %c0_67, %c0_68, %c0_69], %50 {strides = array<i32>} : memref<1x8x2x8x64xf32, #tpu.memory_space<vmem>>, vector<1x8x1x8x64xf32>,
    %cst_70 = arith.constant 0.000000e+00 : f32
    %51 = vector.broadcast %cst_70 : f32 to vector<64x64xf32>
    %c1_71 = arith.constant 1 : index
    %c0_72 = arith.constant 0 : index
    %c0_73 = arith.constant 0 : index
    %52 = vector.load %arg5[%c1_71, %c0_72, %c0_73] : memref<10x10x16xf32, #tpu.memory_space<vmem>>, vector<8x8x16xf32>
    %53 = vector.shape_cast %52 : vector<8x8x16xf32> to vector<64x16xf32>
    %c1_74 = arith.constant 1 : index
    %c0_75 = arith.constant 0 : index
    %c0_76 = arith.constant 0 : index
    %c0_77 = arith.constant 0 : index
    %c0_78 = arith.constant 0 : index
    %54 = vector.load %arg2[%c1_74, %c0_75, %c0_76, %c0_77, %c0_78] : memref<2x2x3x16x64xf32, #tpu.memory_space<vmem>>, vector<1x1x1x16x64xf32>
    %55 = vector.shape_cast %54 : vector<1x1x1x16x64xf32> to vector<16x64xf32>
    %cst_79 = arith.constant dense<0.000000e+00> : vector<64x64xf32>
    %56 = tpu.matmul %53, %55, %cst_79 {dimension_numbers = #tpu.dot_dimension_numbers<[1], [0], [0], [1], [0, 0, 1, 1], [], []>} : vector<64x16xf32>, vector<16x64xf32>, vector<64x64xf32> -> vector<64x64xf32>
    %57 = arith.addf %51, %56 : vector<64x64xf32>
    %c1_80 = arith.constant 1 : index
    %c1_81 = arith.constant 1 : index
    %c0_82 = arith.constant 0 : index
    %58 = vector.load %arg5[%c1_80, %c1_81, %c0_82] : memref<10x10x16xf32, #tpu.memory_space<vmem>>, vector<8x8x16xf32>
    %59 = vector.shape_cast %58 : vector<8x8x16xf32> to vector<64x16xf32>
    %c1_83 = arith.constant 1 : index
    %c0_84 = arith.constant 0 : index
    %c1_85 = arith.constant 1 : index
    %c0_86 = arith.constant 0 : index
    %c0_87 = arith.constant 0 : index
    %60 = vector.load %arg2[%c1_83, %c0_84, %c1_85, %c0_86, %c0_87] : memref<2x2x3x16x64xf32, #tpu.memory_space<vmem>>, vector<1x1x1x16x64xf32>
    %61 = vector.shape_cast %60 : vector<1x1x1x16x64xf32> to vector<16x64xf32>
    %cst_88 = arith.constant dense<0.000000e+00> : vector<64x64xf32>
    %62 = tpu.matmul %59, %61, %cst_88 {dimension_numbers = #tpu.dot_dimension_numbers<[1], [0], [0], [1], [0, 0, 1, 1], [], []>} : vector<64x16xf32>, vector<16x64xf32>, vector<64x64xf32> -> vector<64x64xf32>
    %63 = arith.addf %57, %62 : vector<64x64xf32>
    %c1_89 = arith.constant 1 : index
    %c2_90 = arith.constant 2 : index
    %c0_91 = arith.constant 0 : index
    %64 = vector.load %arg5[%c1_89, %c2_90, %c0_91] : memref<10x10x16xf32, #tpu.memory_space<vmem>>, vector<8x8x16xf32>
    %65 = vector.shape_cast %64 : vector<8x8x16xf32> to vector<64x16xf32>
    %c1_92 = arith.constant 1 : index
    %c0_93 = arith.constant 0 : index
    %c2_94 = arith.constant 2 : index
    %c0_95 = arith.constant 0 : index
    %c0_96 = arith.constant 0 : index
    %66 = vector.load %arg2[%c1_92, %c0_93, %c2_94, %c0_95, %c0_96] : memref<2x2x3x16x64xf32, #tpu.memory_space<vmem>>, vector<1x1x1x16x64xf32>
    %67 = vector.shape_cast %66 : vector<1x1x1x16x64xf32> to vector<16x64xf32>
    %cst_97 = arith.constant dense<0.000000e+00> : vector<64x64xf32>
    %68 = tpu.matmul %65, %67, %cst_97 {dimension_numbers = #tpu.dot_dimension_numbers<[1], [0], [0], [1], [0, 0, 1, 1], [], []>} : vector<64x16xf32>, vector<16x64xf32>, vector<64x64xf32> -> vector<64x64xf32>
    %69 = arith.addf %63, %68 : vector<64x64xf32>
    %c2_98 = arith.constant 2 : index
    %c0_99 = arith.constant 0 : index
    %c0_100 = arith.constant 0 : index
    %70 = vector.load %arg5[%c2_98, %c0_99, %c0_100] : memref<10x10x16xf32, #tpu.memory_space<vmem>>, vector<8x8x16xf32>
    %71 = vector.shape_cast %70 : vector<8x8x16xf32> to vector<64x16xf32>
    %c1_101 = arith.constant 1 : index
    %c1_102 = arith.constant 1 : index
    %c0_103 = arith.constant 0 : index
    %c0_104 = arith.constant 0 : index
    %c0_105 = arith.constant 0 : index
    %72 = vector.load %arg2[%c1_101, %c1_102, %c0_103, %c0_104, %c0_105] : memref<2x2x3x16x64xf32, #tpu.memory_space<vmem>>, vector<1x1x1x16x64xf32>
    %73 = vector.shape_cast %72 : vector<1x1x1x16x64xf32> to vector<16x64xf32>
    %cst_106 = arith.constant dense<0.000000e+00> : vector<64x64xf32>
    %74 = tpu.matmul %71, %73, %cst_106 {dimension_numbers = #tpu.dot_dimension_numbers<[1], [0], [0], [1], [0, 0, 1, 1], [], []>} : vector<64x16xf32>, vector<16x64xf32>, vector<64x64xf32> -> vector<64x64xf32>
    %75 = arith.addf %69, %74 : vector<64x64xf32>
    %c2_107 = arith.constant 2 : index
    %c1_108 = arith.constant 1 : index
    %c0_109 = arith.constant 0 : index
    %76 = vector.load %arg5[%c2_107, %c1_108, %c0_109] : memref<10x10x16xf32, #tpu.memory_space<vmem>>, vector<8x8x16xf32>
    %77 = vector.shape_cast %76 : vector<8x8x16xf32> to vector<64x16xf32>
    %c1_110 = arith.constant 1 : index
    %c1_111 = arith.constant 1 : index
    %c1_112 = arith.constant 1 : index
    %c0_113 = arith.constant 0 : index
    %c0_114 = arith.constant 0 : index
    %78 = vector.load %arg2[%c1_110, %c1_111, %c1_112, %c0_113, %c0_114] : memref<2x2x3x16x64xf32, #tpu.memory_space<vmem>>, vector<1x1x1x16x64xf32>
    %79 = vector.shape_cast %78 : vector<1x1x1x16x64xf32> to vector<16x64xf32>
    %cst_115 = arith.constant dense<0.000000e+00> : vector<64x64xf32>
    %80 = tpu.matmul %77, %79, %cst_115 {dimension_numbers = #tpu.dot_dimension_numbers<[1], [0], [0], [1], [0, 0, 1, 1], [], []>} : vector<64x16xf32>, vector<16x64xf32>, vector<64x64xf32> -> vector<64x64xf32>
    %81 = arith.addf %75, %80 : vector<64x64xf32>
    %c2_116 = arith.constant 2 : index
    %c2_117 = arith.constant 2 : index
    %c0_118 = arith.constant 0 : index
    %82 = vector.load %arg5[%c2_116, %c2_117, %c0_118] : memref<10x10x16xf32, #tpu.memory_space<vmem>>, vector<8x8x16xf32>
    %83 = vector.shape_cast %82 : vector<8x8x16xf32> to vector<64x16xf32>
    %c1_119 = arith.constant 1 : index
    %c1_120 = arith.constant 1 : index
    %c2_121 = arith.constant 2 : index
    %c0_122 = arith.constant 0 : index
    %c0_123 = arith.constant 0 : index
    %84 = vector.load %arg2[%c1_119, %c1_120, %c2_121, %c0_122, %c0_123] : memref<2x2x3x16x64xf32, #tpu.memory_space<vmem>>, vector<1x1x1x16x64xf32>
    %85 = vector.shape_cast %84 : vector<1x1x1x16x64xf32> to vector<16x64xf32>
    %cst_124 = arith.constant dense<0.000000e+00> : vector<64x64xf32>
    %86 = tpu.matmul %83, %85, %cst_124 {dimension_numbers = #tpu.dot_dimension_numbers<[1], [0], [0], [1], [0, 0, 1, 1], [], []>} : vector<64x16xf32>, vector<16x64xf32>, vector<64x64xf32> -> vector<64x64xf32>
    %87 = arith.addf %81, %86 : vector<64x64xf32>
    %88 = vector.broadcast %5 : vector<1x64xf32> to vector<64x64xf32>
    %89 = arith.addf %87, %88 : vector<64x64xf32>
    %cst_125 = arith.constant 0.000000e+00 : f32
    %90 = vector.broadcast %cst_125 : f32 to vector<64x64xf32>
    %91 = arith.maximumf %89, %90 : vector<64x64xf32>
    %92 = vector.shape_cast %91 : vector<64x64xf32> to vector<8x8x64xf32>
    %c0_126 = arith.constant 0 : index
    %c0_127 = arith.constant 0 : index
    %c1_128 = arith.constant 1 : index
    %c0_129 = arith.constant 0 : index
    %c0_130 = arith.constant 0 : index
    %93 = vector.load %arg4[%c0_126, %c0_127, %c1_128, %c0_129, %c0_130] : memref<1x8x2x8x64xf32, #tpu.memory_space<vmem>>, vector<1x8x1x8x64xf32>
    %94 = vector.shape_cast %93 : vector<1x8x1x8x64xf32> to vector<8x8x64xf32>
    %95 = vector.shape_cast %92 : vector<8x8x64xf32> to vector<1x8x1x8x64xf32>
    tpu.vector_store %arg4[%c0_126, %c0_127, %c1_128, %c0_129, %c0_130], %95 {strides = array<i32>} : memref<1x8x2x8x64xf32, #tpu.memory_space<vmem>>, vector<1x8x1x8x64xf32>,
    return
  }
  func.func @transform_0(%arg0: i32) -> (i32, i32, i32, i32) {
    %c0_i32 = arith.constant 0 : i32
    %c0_i32_0 = arith.constant 0 : i32
    %c0_i32_1 = arith.constant 0 : i32
    %c0_i32_2 = arith.constant 0 : i32
    return %arg0, %c0_i32, %c0_i32_0, %c0_i32_1 : i32, i32, i32, i32
  }
  func.func @transform_1(%arg0: i32) -> (i32, i32, i32, i32, i32) {
    %c0_i32 = arith.constant 0 : i32
    %c0_i32_0 = arith.constant 0 : i32
    %c0_i32_1 = arith.constant 0 : i32
    %c0_i32_2 = arith.constant 0 : i32
    %c0_i32_3 = arith.constant 0 : i32
    %c0_i32_4 = arith.constant 0 : i32
    return %c0_i32, %c0_i32_0, %c0_i32_1, %c0_i32_2, %c0_i32_3 : i32, i32, i32, i32, i32
  }
  func.func @transform_2(%arg0: i32) -> (i32, i32) {
    %c0_i32 = arith.constant 0 : i32
    %c0_i32_0 = arith.constant 0 : i32
    %c0_i32_1 = arith.constant 0 : i32
    return %c0_i32, %c0_i32_0 : i32, i32
  }
  func.func @transform_3(%arg0: i32) -> (i32, i32, i32, i32, i32) {
    %c0_i32 = arith.constant 0 : i32
    %c0_i32_0 = arith.constant 0 : i32
    %c0_i32_1 = arith.constant 0 : i32
    %c0_i32_2 = arith.constant 0 : i32
    %c0_i32_3 = arith.constant 0 : i32
    return %arg0, %c0_i32, %c0_i32_0, %c0_i32_1, %c0_i32_2 : i32, i32, i32, i32, i32
  }
}

</mosaic_0001>

<llo_original>
// kernel: _lambda_.1
$region0: #{_lambda_.1}
  #allocation0 [shape = 'u32[]', space=smem, size = 0x4, offset = 0x4, fixed_abs, tag = 'smem constant byte address 0x4 - core index']
  #allocation1 [shape = 'u32[72,128]{1,0:T(1,128)}', space=vmem, size = 0x9000, scoped, tag = 'internal scratch']
  #allocation2 [shape = 'f32[10,10,16]{2,1,0:T(8,128)}', space=vmem, size = 0x14000, scoped, tag = 'scratch operand']
  %s0 = inlined_call_operand.hbm [shape: f32[2,8,8,16], index: 0, kind: input, shape index: {}]
  %s1 = inlined_call_operand.hbm [shape: f32[2,2,3,16,64], index: 1, kind: input, shape index: {}]
  %s2 = inlined_call_operand.vmem [shape: f32[1,64], index: 2, kind: input, shape index: {}]
  %s3 = inlined_call_operand.vmem [shape: f32[2,8,2,8,64], index: 3, kind: output, shape index: {}]
  %s4 = sld [smem:[#allocation0]]
  $region53: #{_lambda_.1} parent=0
    _
  %s6 = ssub.s32 1, %s4
  %s7 = scalar_select 0, %s6, %s4
  $region1: #{_lambda_.1} parent=0
    #allocation3 [shape = 'u8[65536]{0}', space=vmem, size = 0x10000, scoped, tag = 'input window, operand 0']
    #allocation4 [shape = 's32[2]{0}', space=sflag, size = 0x8, scoped, tag = 'scoped memory for _lambda_.1']
    #allocation5 [shape = 'u8[98304]{0}', space=vmem, size = 0x18000, scoped, tag = 'input window, operand 1, single buffered']
    #allocation6 [shape = 's32[1]{0}', space=sflag, size = 0x4, scoped, tag = 'scoped memory for _lambda_.1']
    %8 = vsyncpa [#allocation4], 0
    %s9 = scalar_lea.sflag [#allocation4], 1
    %10 = vsyncpa %s9, 0
    %11 = vsyncpa [#allocation6], 0
    loop: start=0, step=1, limit=4
    $region2: #{_lambda_.1} parent=1 // loop_pre_header
      _
    $region3: #{_lambda_.1} parent=1 // loop_header
      %s13 = sphi 0, %s17
      %p14 = scmp.ge.s32.totalorder %s13, 4
      %s23 = sphi 0, %s25
      %s26 = sphi 0, %s23
      %s27 = sphi 0, %s26
      %s43 = sphi 0, %s27
      %s47 = sphi 0, %s47
      %s49 = sphi 0, %s47
      %s50 = sphi 0, %s49
      %s64 = sphi 0, %s50
      %s68 = sphi 0, %s68
      %s70 = sphi 0, %s68
      %s71 = sphi 0, %s70
      %s85 = sphi 0, %s71
      %s91 = sphi 0, %s93
      %s94 = sphi 0, %s91
      %s95 = sphi 0, %s94
      %s111 = sphi 0, %s95
    $region4: #{_lambda_.1} parent=1 // loop_header_branch
      %16 = sbr.rel (%p14) target = $region8
    $region5: #{_lambda_.1} parent=1 // loop_body
      %s18 = ssub.s32 %s13, 1
      %s19 = ssub.s32 %s13, 2
      %s20 = sadd.s32 %s13, 1
      %s21 = ssub.s32 %s13, %s20
      %p22 = scmp.eq.s32.totalorder %s21, 0
      %s24 = sadd.s32 %s23, 1
      %s25 = scalar_select %p22, %s23, %s24
      %p28 = pneg %p22
      %p29 = scmp.eq.s32.totalorder %s13, 1
      %p30 = por %p28, %p29
      %p31 = scmp.ne.s32.totalorder %s23, %s26
      %p32 = scmp.eq.s32.totalorder %s13, 0
      %p33 = por %p31, %p32
      %p34 = scmp.ne.s32.totalorder %s23, %s26
      %p35 = scmp.eq.s32.totalorder %s18, 1
      %p36 = por %p34, %p35
      %p37 = scmp.ne.s32.totalorder %s26, %s27
      %p38 = scmp.eq.s32.totalorder %s18, 0
      %p39 = por %p37, %p38
      %p40 = scmp.ne.s32.totalorder %s26, %s27
      %p41 = scmp.eq.s32.totalorder %s19, 1
      %p42 = por %p40, %p41
      %p44 = scmp.ne.s32.totalorder %s27, %s43
      %p45 = scmp.eq.s32.totalorder %s19, 0
      %p46 = por %p44, %p45
      %s48 = sadd.s32 %s47, 1
      %p51 = scmp.eq.s32.totalorder %s13, 1
      %p52 = scmp.ne.s32.totalorder %s47, %s49
      %p53 = scmp.eq.s32.totalorder %s13, 0
      %p54 = por %p52, %p53
      %p55 = scmp.ne.s32.totalorder %s47, %s49
      %p56 = scmp.eq.s32.totalorder %s18, 1
      %p57 = por %p55, %p56
      %p58 = scmp.ne.s32.totalorder %s49, %s50
      %p59 = scmp.eq.s32.totalorder %s18, 0
      %p60 = por %p58, %p59
      %p61 = scmp.ne.s32.totalorder %s49, %s50
      %p62 = scmp.eq.s32.totalorder %s19, 1
      %p63 = por %p61, %p62
      %p65 = scmp.ne.s32.totalorder %s50, %s64
      %p66 = scmp.eq.s32.totalorder %s19, 0
      %p67 = por %p65, %p66
      %s69 = sadd.s32 %s68, 1
      %p72 = scmp.eq.s32.totalorder %s13, 1
      %p73 = scmp.ne.s32.totalorder %s68, %s70
      %p74 = scmp.eq.s32.totalorder %s13, 0
      %p75 = por %p73, %p74
      %p76 = scmp.ne.s32.totalorder %s68, %s70
      %p77 = scmp.eq.s32.totalorder %s18, 1
      %p78 = por %p76, %p77
      %p79 = scmp.ne.s32.totalorder %s70, %s71
      %p80 = scmp.eq.s32.totalorder %s18, 0
      %p81 = por %p79, %p80
      %p82 = scmp.ne.s32.totalorder %s70, %s71
      %p83 = scmp.eq.s32.totalorder %s19, 1
      %p84 = por %p82, %p83
      %p86 = scmp.ne.s32.totalorder %s71, %s85
      %p87 = scmp.eq.s32.totalorder %s19, 0
      %p88 = por %p86, %p87
      %s89 = ssub.s32 %s13, %s20
      %p90 = scmp.eq.s32.totalorder %s89, 0
      %s92 = sadd.s32 %s91, 1
      %s93 = scalar_select %p90, %s91, %s92
      %p96 = pneg %p90
      %p97 = scmp.eq.s32.totalorder %s13, 1
      %p98 = por %p96, %p97
      %p99 = scmp.ne.s32.totalorder %s91, %s94
      %p100 = scmp.eq.s32.totalorder %s13, 0
      %p101 = por %p99, %p100
      %p102 = scmp.ne.s32.totalorder %s91, %s94
      %p103 = scmp.eq.s32.totalorder %s18, 1
      %p104 = por %p102, %p103
      %p105 = scmp.ne.s32.totalorder %s94, %s95
      %p106 = scmp.eq.s32.totalorder %s18, 0
      %p107 = por %p105, %p106
      %p108 = scmp.ne.s32.totalorder %s94, %s95
      %p109 = scmp.eq.s32.totalorder %s19, 1
      %p110 = por %p108, %p109
      %p112 = scmp.ne.s32.totalorder %s95, %s111
      %p113 = scmp.eq.s32.totalorder %s19, 0
      %p114 = por %p112, %p113
      %p115 = scmp.le.s32.totalorder 1, %s13
      %p116 = scmp.lt.s32.totalorder %s13, 3
      %p117 = pnand %p115, %p116
      %p118 = pneg %p117
      // Predicated region
      $region9: #{_lambda_.1} parent=5 // pred_check
        _
      $region10: #{_lambda_.1} parent=5 // pred_check_branch
        %120 = sbr.rel (%p117) target = $region12
      $region11: #{_lambda_.1} parent=5 // pred_region
        %s121 = ssub.s32 %s13, 1
        // Predicated region
        $region13: #{_lambda_.1} parent=11 // pred_check
          %p122 = pneg %p60
        $region14: #{_lambda_.1} parent=11 // pred_check_branch
          %124 = sbr.rel (%p122) target = $region16
        $region15: #{_lambda_.1} parent=11 // pred_region
          %126 = vsyncadd [#allocation6], 0
          %s127 = sshll.u32 %s1, 4
          %s128 = int_to_ptr.hbm [resolvable:$true] %s127
          %s129 = sshll.u32 [#allocation5], 4
          %s130 = int_to_ptr.vmem [resolvable:$true] %s129
          %135 = dma.hbm_to_vmem [thread:$0]  %s128, 3072, %s130, [#allocation6], 128, 128, 8
        $region16: #{_lambda_.1} parent=11 // pred_fallthru
          _
        // Predicated region
        $region17: #{_lambda_.1} parent=11 // pred_check
          %p136 = pneg %p81
        $region18: #{_lambda_.1} parent=11 // pred_check_branch
          %138 = sbr.rel (%p136) target = $region20
        $region19: #{_lambda_.1} parent=11 // pred_region
          _
        $region20: #{_lambda_.1} parent=11 // pred_fallthru
          _
      $region12: #{_lambda_.1} parent=5 // pred_fallthru
        _
      %p139 = scmp.lt.s32.totalorder %s13, 2
      // Predicated region
      $region21: #{_lambda_.1} parent=5 // pred_check
        %p140 = pneg %p139
      $region22: #{_lambda_.1} parent=5 // pred_check_branch
        %142 = sbr.rel (%p140) target = $region24
      $region23: #{_lambda_.1} parent=5 // pred_region
        // Predicated region
        $region25: #{_lambda_.1} parent=23 // pred_check
          %p143 = pneg %p33
        $region26: #{_lambda_.1} parent=23 // pred_check_branch
          %145 = sbr.rel (%p143) target = $region28
        $region27: #{_lambda_.1} parent=23 // pred_region
          %s146 = sand.u32 %s23, 1
          %s147 = scalar_lea.sflag [#allocation4], %s146
          %s148 = sand.u32 %s23, 1
          %s149 = smul.addr %s148, 64
          %s150 = scalar_lea.vmem [#allocation3], %s149
          %152 = vsyncadd %s147, 0
          %s153 = smul.addr %s13, 8
          %s154 = smul.addr %s153, 8
          %s155 = scalar_lea.hbm %s0, %s154
          %s156 = sshll.u32 %s155, 4
          %s157 = int_to_ptr.hbm [resolvable:$true] %s156
          %s158 = sshll.u32 %s150, 4
          %s159 = int_to_ptr.vmem [resolvable:$true] %s158
          %164 = dma.hbm_to_vmem [thread:$0]  %s157, 1024, %s159, %s147, 128, 128, 8
        $region28: #{_lambda_.1} parent=23 // pred_fallthru
          _
      $region24: #{_lambda_.1} parent=5 // pred_fallthru
        _
      %p165 = scmp.le.s32.totalorder 1, %s13
      %p166 = scmp.lt.s32.totalorder %s13, 3
      %p167 = pnand %p165, %p166
      %p168 = pneg %p167
      // Predicated region
      $region29: #{_lambda_.1} parent=5 // pred_check
        _
      $region30: #{_lambda_.1} parent=5 // pred_check_branch
        %170 = sbr.rel (%p167) target = $region32
      $region31: #{_lambda_.1} parent=5 // pred_region
        %s171 = ssub.s32 %s13, 1
        %s172 = sand.u32 %s26, 1
        %s173 = scalar_lea.sflag [#allocation4], %s172
        %s174 = sand.u32 %s26, 1
        %s175 = smul.addr %s174, 64
        %s176 = scalar_lea.vmem [#allocation3], %s175
        // Predicated region
        $region33: #{_lambda_.1} parent=31 // pred_check
          %p177 = pneg %p39
        $region34: #{_lambda_.1} parent=31 // pred_check_branch
          %179 = sbr.rel (%p177) target = $region36
        $region35: #{_lambda_.1} parent=31 // pred_region
          %181 = dma.done %s173, 1024
        $region36: #{_lambda_.1} parent=31 // pred_fallthru
          _
        // Predicated region
        $region37: #{_lambda_.1} parent=31 // pred_check
          %p182 = pneg %p60
        $region38: #{_lambda_.1} parent=31 // pred_check_branch
          %184 = sbr.rel (%p182) target = $region40
        $region39: #{_lambda_.1} parent=31 // pred_region
          %186 = dma.done [#allocation6], 3072
        $region40: #{_lambda_.1} parent=31 // pred_fallthru
          _
        %s187 = sand.u32 %s26, 1
        %s188 = scalar_lea.sflag [#allocation4], %s187
        %s189 = sand.u32 %s26, 1
        %s190 = smul.addr %s189, 64
        %s191 = scalar_lea.vmem [#allocation3], %s190
        %p192 = pneg %p39
        %p193 = pneg %p36
        %p194 = pneg %p60
        %p195 = pneg %p57
        %p196 = pneg %p81
        %p197 = pneg %p78
        %p198 = pneg %p107
        %p199 = pneg %p104
        %p200 = scmp.lt.s32.totalorder %s18, 1
        %s201 = scalar_select %p200, %s18, 1
        %s202 = smul.addr %s201, 16
        %s203 = smul.addr %s202, 8
        %s204 = scalar_lea.vmem %s3, %s203
        %p205 = scmp.lt.s32.totalorder %s18, 1
        %s206 = scalar_select %p205, %s18, 1
        %s207 = smul.addr %s206, 16
        %s208 = smul.addr %s207, 8
        %s209 = scalar_lea.vmem %s3, %s208
        %vm210 = vcmask 130048
        %211 = vst.msk [vmem:[#allocation2] sm:$0xff] %vm210, 0.0
        %vm212 = vcmask 123904
        %213 = vst.msk [vmem:[#allocation2 + $0x8] sm:$0x3] %vm212, 0.0
        %214 = vst.msk [vmem:[#allocation2 + $0x10] sm:$0xff] %vm210, 0.0
        %215 = vst.msk [vmem:[#allocation2 + $0x18] sm:$0x3] %vm212, 0.0
        %216 = vst.msk [vmem:[#allocation2 + $0x20] sm:$0xff] %vm210, 0.0
        %217 = vst.msk [vmem:[#allocation2 + $0x28] sm:$0x3] %vm212, 0.0
        %218 = vst.msk [vmem:[#allocation2 + $0x30] sm:$0xff] %vm210, 0.0
        %219 = vst.msk [vmem:[#allocation2 + $0x38] sm:$0x3] %vm212, 0.0
        %220 = vst.msk [vmem:[#allocation2 + $0x40] sm:$0xff] %vm210, 0.0
        %221 = vst.msk [vmem:[#allocation2 + $0x48] sm:$0x3] %vm212, 0.0
        %222 = vst.msk [vmem:[#allocation2 + $0x50] sm:$0xff] %vm210, 0.0
        %223 = vst.msk [vmem:[#allocation2 + $0x58] sm:$0x3] %vm212, 0.0
        %224 = vst.msk [vmem:[#allocation2 + $0x60] sm:$0xff] %vm210, 0.0
        %225 = vst.msk [vmem:[#allocation2 + $0x68] sm:$0x3] %vm212, 0.0
        %226 = vst.msk [vmem:[#allocation2 + $0x70] sm:$0xff] %vm210, 0.0
        %227 = vst.msk [vmem:[#allocation2 + $0x78] sm:$0x3] %vm212, 0.0
        %228 = vst.msk [vmem:[#allocation2 + $0x80] sm:$0xff] %vm210, 0.0
        %229 = vst.msk [vmem:[#allocation2 + $0x88] sm:$0x3] %vm212, 0.0
        %230 = vst.msk [vmem:[#allocation2 + $0x90] sm:$0xff] %vm210, 0.0
        %231 = vst.msk [vmem:[#allocation2 + $0x98] sm:$0x3] %vm212, 0.0
        %v232 = vld [vmem:[%s176] sm:$0xff]
        %v233 = vld [vmem:[%s176 + $0x8] sm:$0xff]
        %v234 = vld [vmem:[%s176 + $0x10] sm:$0xff]
        %v235 = vld [vmem:[%s176 + $0x18] sm:$0xff]
        %v236 = vld [vmem:[%s176 + $0x20] sm:$0xff]
        %v237 = vld [vmem:[%s176 + $0x28] sm:$0xff]
        %v238 = vld [vmem:[%s176 + $0x30] sm:$0xff]
        %v239 = vld [vmem:[%s176 + $0x38] sm:$0xff]
        %s240 = scalar_lea.vmem [#allocation2], 16
        %241 = vst.msk [vmem:[%s240 + $0x1] sm:$0xff] %vm210, %v232
        %242 = vst.msk [vmem:[%s240 + $0x11] sm:$0xff] %vm210, %v233
        %243 = vst.msk [vmem:[%s240 + $0x21] sm:$0xff] %vm210, %v234
        %244 = vst.msk [vmem:[%s240 + $0x31] sm:$0xff] %vm210, %v235
        %245 = vst.msk [vmem:[%s240 + $0x41] sm:$0xff] %vm210, %v236
        %246 = vst.msk [vmem:[%s240 + $0x51] sm:$0xff] %vm210, %v237
        %247 = vst.msk [vmem:[%s240 + $0x61] sm:$0xff] %vm210, %v238
        %248 = vst.msk [vmem:[%s240 + $0x71] sm:$0xff] %vm210, %v239
        %v249 = vld [vmem:[%s2] sm:$0x1]
        %v250 = vld [vmem:[#allocation2] sm:$0xff]
        %v251 = vld [vmem:[#allocation2 + $0x10] sm:$0xff]
        %v252 = vld [vmem:[#allocation2 + $0x20] sm:$0xff]
        %v253 = vld [vmem:[#allocation2 + $0x30] sm:$0xff]
        %v254 = vld [vmem:[#allocation2 + $0x40] sm:$0xff]
        %v255 = vld [vmem:[#allocation2 + $0x50] sm:$0xff]
        %v256 = vld [vmem:[#allocation2 + $0x60] sm:$0xff]
        %v257 = vld [vmem:[#allocation2 + $0x70] sm:$0xff]
        %v258 = vld [vmem:[#allocation5] sm:$0xff]
        %v259 = vld [vmem:[#allocation5 + $0x8] sm:$0xff]
        %v260 = vld [vmem:[#allocation2 + $0x1] sm:$0xff]
        %v261 = vld [vmem:[#allocation2 + $0x11] sm:$0xff]
        %v262 = vld [vmem:[#allocation2 + $0x21] sm:$0xff]
        %v263 = vld [vmem:[#allocation2 + $0x31] sm:$0xff]
        %v264 = vld [vmem:[#allocation2 + $0x41] sm:$0xff]
        %v265 = vld [vmem:[#allocation2 + $0x51] sm:$0xff]
        %v266 = vld [vmem:[#allocation2 + $0x61] sm:$0xff]
        %v267 = vld [vmem:[#allocation2 + $0x71] sm:$0xff]
        %s268 = scalar_lea.vmem [#allocation5], 16
        %v269 = vld [vmem:[%s268] sm:$0xff]
        %v270 = vld [vmem:[%s268 + $0x8] sm:$0xff]
        %v272 = vsel %vm210, %v260, 0
        %v275 = vsel %vm210, %v261, 0
        %v278 = vsel %vm210, %v262, 0
        %v281 = vsel %vm210, %v263, 0
        %v284 = vsel %vm210, %v264, 0
        %v287 = vsel %vm210, %v265, 0
        %v290 = vsel %vm210, %v266, 0
        %v293 = vsel %vm210, %v267, 0
        %295 = vmatpush.msra.mxu0 0.0
        %296 = vmatpush.msra.mxu0 0.0
        %297 = vmatpush.msra.mxu0 0.0
        %298 = vmatpush.msra.mxu0 0.0
        %299 = vmatpush.msra.mxu0 0.0
        %300 = vmatpush.msra.mxu0 0.0
        %301 = vmatpush.msra.mxu0 0.0
        %302 = vmatpush.msra.mxu0 0.0
        %303 = vmatpush.msra.mxu0 0.0
        %304 = vmatpush.msra.mxu0 0.0
        %305 = vmatpush.msra.mxu0 0.0
        %306 = vmatpush.msra.mxu0 0.0
        %307 = vmatpush.msra.mxu0 0.0
        %308 = vmatpush.msra.mxu0 0.0
        %309 = vmatpush.msra.mxu0 %v270
        %310 = vmatpush.msra.mxu0 %v269
        %311 = vmatmul.f32.gmra.mxu0 %v272
        %v312 = vpop.f32.mrf.mxu0
        %v313 = vadd.f32 0.0, %v312
        %314 = vmatmul.f32.gmra.mxu0 %v275
        %v315 = vpop.f32.mrf.mxu0
        %v316 = vadd.f32 0.0, %v315
        %317 = vmatmul.f32.gmra.mxu0 %v278
        %v318 = vpop.f32.mrf.mxu0
        %v319 = vadd.f32 0.0, %v318
        %320 = vmatmul.f32.gmra.mxu0 %v281
        %v321 = vpop.f32.mrf.mxu0
        %v322 = vadd.f32 0.0, %v321
        %323 = vmatmul.f32.gmra.mxu0 %v284
        %v324 = vpop.f32.mrf.mxu0
        %v325 = vadd.f32 0.0, %v324
        %326 = vmatmul.f32.gmra.mxu0 %v287
        %v327 = vpop.f32.mrf.mxu0
        %v328 = vadd.f32 0.0, %v327
        %329 = vmatmul.f32.gmra.mxu0 %v290
        %v330 = vpop.f32.mrf.mxu0
        %v331 = vadd.f32 0.0, %v330
        %332 = vmatmul.f32.gmra.mxu0 %v293
        %v333 = vpop.f32.mrf.mxu0
        %v334 = vadd.f32 0.0, %v333
        %335 = vdwg.mxu0
        %v337 = vsel %vm210, %v250, 0
        %v340 = vsel %vm210, %v251, 0
        %v343 = vsel %vm210, %v252, 0
        %v346 = vsel %vm210, %v253, 0
        %v349 = vsel %vm210, %v254, 0
        %v352 = vsel %vm210, %v255, 0
        %v355 = vsel %vm210, %v256, 0
        %v358 = vsel %vm210, %v257, 0
        %360 = vmatpush.msra.mxu0 0.0
        %361 = vmatpush.msra.mxu0 0.0
        %362 = vmatpush.msra.mxu0 0.0
        %363 = vmatpush.msra.mxu0 0.0
        %364 = vmatpush.msra.mxu0 0.0
        %365 = vmatpush.msra.mxu0 0.0
        %366 = vmatpush.msra.mxu0 0.0
        %367 = vmatpush.msra.mxu0 0.0
        %368 = vmatpush.msra.mxu0 0.0
        %369 = vmatpush.msra.mxu0 0.0
        %370 = vmatpush.msra.mxu0 0.0
        %371 = vmatpush.msra.mxu0 0.0
        %372 = vmatpush.msra.mxu0 0.0
        %373 = vmatpush.msra.mxu0 0.0
        %374 = vmatpush.msra.mxu0 %v259
        %375 = vmatpush.msra.mxu0 %v258
        %376 = vmatmul.f32.gmra.mxu0 %v337
        %v377 = vpop.f32.mrf.mxu0
        %v378 = vadd.f32 %v313, %v377
        %379 = vmatmul.f32.gmra.mxu0 %v340
        %v380 = vpop.f32.mrf.mxu0
        %v381 = vadd.f32 %v316, %v380
        %382 = vmatmul.f32.gmra.mxu0 %v343
        %v383 = vpop.f32.mrf.mxu0
        %v384 = vadd.f32 %v319, %v383
        %385 = vmatmul.f32.gmra.mxu0 %v346
        %v386 = vpop.f32.mrf.mxu0
        %v387 = vadd.f32 %v322, %v386
        %388 = vmatmul.f32.gmra.mxu0 %v349
        %v389 = vpop.f32.mrf.mxu0
        %v390 = vadd.f32 %v325, %v389
        %391 = vmatmul.f32.gmra.mxu0 %v352
        %v392 = vpop.f32.mrf.mxu0
        %v393 = vadd.f32 %v328, %v392
        %394 = vmatmul.f32.gmra.mxu0 %v355
        %v395 = vpop.f32.mrf.mxu0
        %v396 = vadd.f32 %v331, %v395
        %397 = vmatmul.f32.gmra.mxu0 %v358
        %v398 = vpop.f32.mrf.mxu0
        %v399 = vadd.f32 %v334, %v398
        %400 = vdwg.mxu0
        %v401 = vld [vmem:[#allocation2 + $0x2] sm:$0xff]
        %v402 = vld [vmem:[#allocation2 + $0x12] sm:$0xff]
        %v403 = vld [vmem:[#allocation2 + $0x22] sm:$0xff]
        %v404 = vld [vmem:[#allocation2 + $0x32] sm:$0xff]
        %v405 = vld [vmem:[#allocation2 + $0x42] sm:$0xff]
        %v406 = vld [vmem:[#allocation2 + $0x52] sm:$0xff]
        %v407 = vld [vmem:[#allocation2 + $0x62] sm:$0xff]
        %v408 = vld [vmem:[#allocation2 + $0x72] sm:$0xff]
        %s409 = scalar_lea.vmem [#allocation5], 32
        %v410 = vld [vmem:[%s409] sm:$0xff]
        %v411 = vld [vmem:[%s409 + $0x8] sm:$0xff]
        %v413 = vsel %vm210, %v401, 0
        %v416 = vsel %vm210, %v402, 0
        %v419 = vsel %vm210, %v403, 0
        %v422 = vsel %vm210, %v404, 0
        %v425 = vsel %vm210, %v405, 0
        %v428 = vsel %vm210, %v406, 0
        %v431 = vsel %vm210, %v407, 0
        %v434 = vsel %vm210, %v408, 0
        %436 = vmatpush.msra.mxu0 0.0
        %437 = vmatpush.msra.mxu0 0.0
        %438 = vmatpush.msra.mxu0 0.0
        %439 = vmatpush.msra.mxu0 0.0
        %440 = vmatpush.msra.mxu0 0.0
        %441 = vmatpush.msra.mxu0 0.0
        %442 = vmatpush.msra.mxu0 0.0
        %443 = vmatpush.msra.mxu0 0.0
        %444 = vmatpush.msra.mxu0 0.0
        %445 = vmatpush.msra.mxu0 0.0
        %446 = vmatpush.msra.mxu0 0.0
        %447 = vmatpush.msra.mxu0 0.0
        %448 = vmatpush.msra.mxu0 0.0
        %449 = vmatpush.msra.mxu0 0.0
        %450 = vmatpush.msra.mxu0 %v411
        %451 = vmatpush.msra.mxu0 %v410
        %452 = vmatmul.f32.gmra.mxu0 %v413
        %v453 = vpop.f32.mrf.mxu0
        %v454 = vadd.f32 0.0, %v453
        %455 = vmatmul.f32.gmra.mxu0 %v416
        %v456 = vpop.f32.mrf.mxu0
        %v457 = vadd.f32 0.0, %v456
        %458 = vmatmul.f32.gmra.mxu0 %v419
        %v459 = vpop.f32.mrf.mxu0
        %v460 = vadd.f32 0.0, %v459
        %461 = vmatmul.f32.gmra.mxu0 %v422
        %v462 = vpop.f32.mrf.mxu0
        %v463 = vadd.f32 0.0, %v462
        %464 = vmatmul.f32.gmra.mxu0 %v425
        %v465 = vpop.f32.mrf.mxu0
        %v466 = vadd.f32 0.0, %v465
        %467 = vmatmul.f32.gmra.mxu0 %v428
        %v468 = vpop.f32.mrf.mxu0
        %v469 = vadd.f32 0.0, %v468
        %470 = vmatmul.f32.gmra.mxu0 %v431
        %v471 = vpop.f32.mrf.mxu0
        %v472 = vadd.f32 0.0, %v471
        %473 = vmatmul.f32.gmra.mxu0 %v434
        %v474 = vpop.f32.mrf.mxu0
        %v475 = vadd.f32 0.0, %v474
        %476 = vdwg.mxu0
        %v477 = vadd.f32 %v378, %v454
        %v478 = vadd.f32 %v381, %v457
        %v479 = vadd.f32 %v384, %v460
        %v480 = vadd.f32 %v387, %v463
        %v481 = vadd.f32 %v390, %v466
        %v482 = vadd.f32 %v393, %v469
        %v483 = vadd.f32 %v396, %v472
        %v484 = vadd.f32 %v399, %v475
        %v485 = vld [vmem:[%s240] sm:$0xff]
        %v486 = vld [vmem:[%s240 + $0x10] sm:$0xff]
        %v487 = vld [vmem:[%s240 + $0x20] sm:$0xff]
        %v488 = vld [vmem:[%s240 + $0x30] sm:$0xff]
        %v489 = vld [vmem:[%s240 + $0x40] sm:$0xff]
        %v490 = vld [vmem:[%s240 + $0x50] sm:$0xff]
        %v491 = vld [vmem:[%s240 + $0x60] sm:$0xff]
        %v492 = vld [vmem:[%s240 + $0x70] sm:$0xff]
        %s493 = scalar_lea.vmem [#allocation5], 48
        %v494 = vld [vmem:[%s493] sm:$0xff]
        %v495 = vld [vmem:[%s493 + $0x8] sm:$0xff]
        %v497 = vsel %vm210, %v485, 0
        %v500 = vsel %vm210, %v486, 0
        %v503 = vsel %vm210, %v487, 0
        %v506 = vsel %vm210, %v488, 0
        %v509 = vsel %vm210, %v489, 0
        %v512 = vsel %vm210, %v490, 0
        %v515 = vsel %vm210, %v491, 0
        %v518 = vsel %vm210, %v492, 0
        %520 = vmatpush.msra.mxu0 0.0
        %521 = vmatpush.msra.mxu0 0.0
        %522 = vmatpush.msra.mxu0 0.0
        %523 = vmatpush.msra.mxu0 0.0
        %524 = vmatpush.msra.mxu0 0.0
        %525 = vmatpush.msra.mxu0 0.0
        %526 = vmatpush.msra.mxu0 0.0
        %527 = vmatpush.msra.mxu0 0.0
        %528 = vmatpush.msra.mxu0 0.0
        %529 = vmatpush.msra.mxu0 0.0
        %530 = vmatpush.msra.mxu0 0.0
        %531 = vmatpush.msra.mxu0 0.0
        %532 = vmatpush.msra.mxu0 0.0
        %533 = vmatpush.msra.mxu0 0.0
        %534 = vmatpush.msra.mxu0 %v495
        %535 = vmatpush.msra.mxu0 %v494
        %536 = vmatmul.f32.gmra.mxu0 %v497
        %v537 = vpop.f32.mrf.mxu0
        %v538 = vadd.f32 0.0, %v537
        %539 = vmatmul.f32.gmra.mxu0 %v500
        %v540 = vpop.f32.mrf.mxu0
        %v541 = vadd.f32 0.0, %v540
        %542 = vmatmul.f32.gmra.mxu0 %v503
        %v543 = vpop.f32.mrf.mxu0
        %v544 = vadd.f32 0.0, %v543
        %545 = vmatmul.f32.gmra.mxu0 %v506
        %v546 = vpop.f32.mrf.mxu0
        %v547 = vadd.f32 0.0, %v546
        %548 = vmatmul.f32.gmra.mxu0 %v509
        %v549 = vpop.f32.mrf.mxu0
        %v550 = vadd.f32 0.0, %v549
        %551 = vmatmul.f32.gmra.mxu0 %v512
        %v552 = vpop.f32.mrf.mxu0
        %v553 = vadd.f32 0.0, %v552
        %554 = vmatmul.f32.gmra.mxu0 %v515
        %v555 = vpop.f32.mrf.mxu0
        %v556 = vadd.f32 0.0, %v555
        %557 = vmatmul.f32.gmra.mxu0 %v518
        %v558 = vpop.f32.mrf.mxu0
        %v559 = vadd.f32 0.0, %v558
        %560 = vdwg.mxu0
        %v561 = vadd.f32 %v477, %v538
        %v562 = vadd.f32 %v478, %v541
        %v563 = vadd.f32 %v479, %v544
        %v564 = vadd.f32 %v480, %v547
        %v565 = vadd.f32 %v481, %v550
        %v566 = vadd.f32 %v482, %v553
        %v567 = vadd.f32 %v483, %v556
        %v568 = vadd.f32 %v484, %v559
        %v569 = vld [vmem:[%s240 + $0x1] sm:$0xff]
        %v570 = vld [vmem:[%s240 + $0x11] sm:$0xff]
        %v571 = vld [vmem:[%s240 + $0x21] sm:$0xff]
        %v572 = vld [vmem:[%s240 + $0x31] sm:$0xff]
        %v573 = vld [vmem:[%s240 + $0x41] sm:$0xff]
        %v574 = vld [vmem:[%s240 + $0x51] sm:$0xff]
        %v575 = vld [vmem:[%s240 + $0x61] sm:$0xff]
        %v576 = vld [vmem:[%s240 + $0x71] sm:$0xff]
        %s577 = scalar_lea.vmem [#allocation5], 64
        %v578 = vld [vmem:[%s577] sm:$0xff]
        %v579 = vld [vmem:[%s577 + $0x8] sm:$0xff]
        %v581 = vsel %vm210, %v569, 0
        %v584 = vsel %vm210, %v570, 0
        %v587 = vsel %vm210, %v571, 0
        %v590 = vsel %vm210, %v572, 0
        %v593 = vsel %vm210, %v573, 0
        %v596 = vsel %vm210, %v574, 0
        %v599 = vsel %vm210, %v575, 0
        %v602 = vsel %vm210, %v576, 0
        %604 = vmatpush.msra.mxu0 0.0
        %605 = vmatpush.msra.mxu0 0.0
        %606 = vmatpush.msra.mxu0 0.0
        %607 = vmatpush.msra.mxu0 0.0
        %608 = vmatpush.msra.mxu0 0.0
        %609 = vmatpush.msra.mxu0 0.0
        %610 = vmatpush.msra.mxu0 0.0
        %611 = vmatpush.msra.mxu0 0.0
        %612 = vmatpush.msra.mxu0 0.0
        %613 = vmatpush.msra.mxu0 0.0
        %614 = vmatpush.msra.mxu0 0.0
        %615 = vmatpush.msra.mxu0 0.0
        %616 = vmatpush.msra.mxu0 0.0
        %617 = vmatpush.msra.mxu0 0.0
        %618 = vmatpush.msra.mxu0 %v579
        %619 = vmatpush.msra.mxu0 %v578
        %620 = vmatmul.f32.gmra.mxu0 %v581
        %v621 = vpop.f32.mrf.mxu0
        %v622 = vadd.f32 0.0, %v621
        %623 = vmatmul.f32.gmra.mxu0 %v584
        %v624 = vpop.f32.mrf.mxu0
        %v625 = vadd.f32 0.0, %v624
        %626 = vmatmul.f32.gmra.mxu0 %v587
        %v627 = vpop.f32.mrf.mxu0
        %v628 = vadd.f32 0.0, %v627
        %629 = vmatmul.f32.gmra.mxu0 %v590
        %v630 = vpop.f32.mrf.mxu0
        %v631 = vadd.f32 0.0, %v630
        %632 = vmatmul.f32.gmra.mxu0 %v593
        %v633 = vpop.f32.mrf.mxu0
        %v634 = vadd.f32 0.0, %v633
        %635 = vmatmul.f32.gmra.mxu0 %v596
        %v636 = vpop.f32.mrf.mxu0
        %v637 = vadd.f32 0.0, %v636
        %638 = vmatmul.f32.gmra.mxu0 %v599
        %v639 = vpop.f32.mrf.mxu0
        %v640 = vadd.f32 0.0, %v639
        %641 = vmatmul.f32.gmra.mxu0 %v602
        %v642 = vpop.f32.mrf.mxu0
        %v643 = vadd.f32 0.0, %v642
        %644 = vdwg.mxu0
        %v645 = vadd.f32 %v561, %v622
        %v646 = vadd.f32 %v562, %v625
        %v647 = vadd.f32 %v563, %v628
        %v648 = vadd.f32 %v564, %v631
        %v649 = vadd.f32 %v565, %v634
        %v650 = vadd.f32 %v566, %v637
        %v651 = vadd.f32 %v567, %v640
        %v652 = vadd.f32 %v568, %v643
        %v653 = vld [vmem:[%s240 + $0x2] sm:$0xff]
        %v654 = vld [vmem:[%s240 + $0x12] sm:$0xff]
        %v655 = vld [vmem:[%s240 + $0x22] sm:$0xff]
        %v656 = vld [vmem:[%s240 + $0x32] sm:$0xff]
        %v657 = vld [vmem:[%s240 + $0x42] sm:$0xff]
        %v658 = vld [vmem:[%s240 + $0x52] sm:$0xff]
        %v659 = vld [vmem:[%s240 + $0x62] sm:$0xff]
        %v660 = vld [vmem:[%s240 + $0x72] sm:$0xff]
        %s661 = scalar_lea.vmem [#allocation5], 80
        %v662 = vld [vmem:[%s661] sm:$0xff]
        %v663 = vld [vmem:[%s661 + $0x8] sm:$0xff]
        %v665 = vsel %vm210, %v653, 0
        %v668 = vsel %vm210, %v654, 0
        %v671 = vsel %vm210, %v655, 0
        %v674 = vsel %vm210, %v656, 0
        %v677 = vsel %vm210, %v657, 0
        %v680 = vsel %vm210, %v658, 0
        %v683 = vsel %vm210, %v659, 0
        %v686 = vsel %vm210, %v660, 0
        %688 = vmatpush.msra.mxu0 0.0
        %689 = vmatpush.msra.mxu0 0.0
        %690 = vmatpush.msra.mxu0 0.0
        %691 = vmatpush.msra.mxu0 0.0
        %692 = vmatpush.msra.mxu0 0.0
        %693 = vmatpush.msra.mxu0 0.0
        %694 = vmatpush.msra.mxu0 0.0
        %695 = vmatpush.msra.mxu0 0.0
        %696 = vmatpush.msra.mxu0 0.0
        %697 = vmatpush.msra.mxu0 0.0
        %698 = vmatpush.msra.mxu0 0.0
        %699 = vmatpush.msra.mxu0 0.0
        %700 = vmatpush.msra.mxu0 0.0
        %701 = vmatpush.msra.mxu0 0.0
        %702 = vmatpush.msra.mxu0 %v663
        %703 = vmatpush.msra.mxu0 %v662
        %704 = vmatmul.f32.gmra.mxu0 %v665
        %v705 = vpop.f32.mrf.mxu0
        %v706 = vadd.f32 0.0, %v705
        %707 = vmatmul.f32.gmra.mxu0 %v668
        %v708 = vpop.f32.mrf.mxu0
        %v709 = vadd.f32 0.0, %v708
        %710 = vmatmul.f32.gmra.mxu0 %v671
        %v711 = vpop.f32.mrf.mxu0
        %v712 = vadd.f32 0.0, %v711
        %713 = vmatmul.f32.gmra.mxu0 %v674
        %v714 = vpop.f32.mrf.mxu0
        %v715 = vadd.f32 0.0, %v714
        %716 = vmatmul.f32.gmra.mxu0 %v677
        %v717 = vpop.f32.mrf.mxu0
        %v718 = vadd.f32 0.0, %v717
        %719 = vmatmul.f32.gmra.mxu0 %v680
        %v720 = vpop.f32.mrf.mxu0
        %v721 = vadd.f32 0.0, %v720
        %722 = vmatmul.f32.gmra.mxu0 %v683
        %v723 = vpop.f32.mrf.mxu0
        %v724 = vadd.f32 0.0, %v723
        %725 = vmatmul.f32.gmra.mxu0 %v686
        %v726 = vpop.f32.mrf.mxu0
        %v727 = vadd.f32 0.0, %v726
        %728 = vdwg.mxu0
        %v729 = vadd.f32 %v645, %v706
        %v730 = vadd.f32 %v646, %v709
        %v731 = vadd.f32 %v647, %v712
        %v732 = vadd.f32 %v648, %v715
        %v733 = vadd.f32 %v649, %v718
        %v734 = vadd.f32 %v650, %v721
        %v735 = vadd.f32 %v651, %v724
        %v736 = vadd.f32 %v652, %v727
        %v738 = vperm.slane %v249, 0
        %v740 = vadd.f32 %v729, %v738
        %v741 = vadd.f32 %v730, %v738
        %v742 = vadd.f32 %v731, %v738
        %v743 = vadd.f32 %v732, %v738
        %v744 = vadd.f32 %v733, %v738
        %v745 = vadd.f32 %v734, %v738
        %v746 = vadd.f32 %v735, %v738
        %v747 = vadd.f32 %v736, %v738
        %v748 = vmax.f32 %v740, 0.0
        %v749 = vmax.f32 %v741, 0.0
        %v750 = vmax.f32 %v742, 0.0
        %v751 = vmax.f32 %v743, 0.0
        %v752 = vmax.f32 %v744, 0.0
        %v753 = vmax.f32 %v745, 0.0
        %v754 = vmax.f32 %v746, 0.0
        %v755 = vmax.f32 %v747, 0.0
        %vm756 = vcmask 523264
        %757 = vst.msk [vmem:[%s209] sm:$0xff] %vm756, %v748
        %758 = vst.msk [vmem:[%s209 + $0x10] sm:$0xff] %vm756, %v749
        %759 = vst.msk [vmem:[%s209 + $0x20] sm:$0xff] %vm756, %v750
        %760 = vst.msk [vmem:[%s209 + $0x30] sm:$0xff] %vm756, %v751
        %761 = vst.msk [vmem:[%s209 + $0x40] sm:$0xff] %vm756, %v752
        %762 = vst.msk [vmem:[%s209 + $0x50] sm:$0xff] %vm756, %v753
        %763 = vst.msk [vmem:[%s209 + $0x60] sm:$0xff] %vm756, %v754
        %764 = vst.msk [vmem:[%s209 + $0x70] sm:$0xff] %vm756, %v755
        %v765 = vld [vmem:[%s240] sm:$0xff]
        %v766 = vld [vmem:[%s240 + $0x10] sm:$0xff]
        %v767 = vld [vmem:[%s240 + $0x20] sm:$0xff]
        %v768 = vld [vmem:[%s240 + $0x30] sm:$0xff]
        %v769 = vld [vmem:[%s240 + $0x40] sm:$0xff]
        %v770 = vld [vmem:[%s240 + $0x50] sm:$0xff]
        %v771 = vld [vmem:[%s240 + $0x60] sm:$0xff]
        %v772 = vld [vmem:[%s240 + $0x70] sm:$0xff]
        %s773 = scalar_lea.vmem [#allocation5], 96
        %v774 = vld [vmem:[%s773] sm:$0xff]
        %v775 = vld [vmem:[%s773 + $0x8] sm:$0xff]
        %v776 = vld [vmem:[%s240 + $0x1] sm:$0xff]
        %v777 = vld [vmem:[%s240 + $0x11] sm:$0xff]
        %v778 = vld [vmem:[%s240 + $0x21] sm:$0xff]
        %v779 = vld [vmem:[%s240 + $0x31] sm:$0xff]
        %v780 = vld [vmem:[%s240 + $0x41] sm:$0xff]
        %v781 = vld [vmem:[%s240 + $0x51] sm:$0xff]
        %v782 = vld [vmem:[%s240 + $0x61] sm:$0xff]
        %v783 = vld [vmem:[%s240 + $0x71] sm:$0xff]
        %s784 = scalar_lea.vmem [#allocation5], 112
        %v785 = vld [vmem:[%s784] sm:$0xff]
        %v786 = vld [vmem:[%s784 + $0x8] sm:$0xff]
        %v788 = vsel %vm210, %v776, 0
        %v791 = vsel %vm210, %v777, 0
        %v794 = vsel %vm210, %v778, 0
        %v797 = vsel %vm210, %v779, 0
        %v800 = vsel %vm210, %v780, 0
        %v803 = vsel %vm210, %v781, 0
        %v806 = vsel %vm210, %v782, 0
        %v809 = vsel %vm210, %v783, 0
        %811 = vmatpush.msra.mxu0 0.0
        %812 = vmatpush.msra.mxu0 0.0
        %813 = vmatpush.msra.mxu0 0.0
        %814 = vmatpush.msra.mxu0 0.0
        %815 = vmatpush.msra.mxu0 0.0
        %816 = vmatpush.msra.mxu0 0.0
        %817 = vmatpush.msra.mxu0 0.0
        %818 = vmatpush.msra.mxu0 0.0
        %819 = vmatpush.msra.mxu0 0.0
        %820 = vmatpush.msra.mxu0 0.0
        %821 = vmatpush.msra.mxu0 0.0
        %822 = vmatpush.msra.mxu0 0.0
        %823 = vmatpush.msra.mxu0 0.0
        %824 = vmatpush.msra.mxu0 0.0
        %825 = vmatpush.msra.mxu0 %v786
        %826 = vmatpush.msra.mxu0 %v785
        %827 = vmatmul.f32.gmra.mxu0 %v788
        %v828 = vpop.f32.mrf.mxu0
        %v829 = vadd.f32 0.0, %v828
        %830 = vmatmul.f32.gmra.mxu0 %v791
        %v831 = vpop.f32.mrf.mxu0
        %v832 = vadd.f32 0.0, %v831
        %833 = vmatmul.f32.gmra.mxu0 %v794
        %v834 = vpop.f32.mrf.mxu0
        %v835 = vadd.f32 0.0, %v834
        %836 = vmatmul.f32.gmra.mxu0 %v797
        %v837 = vpop.f32.mrf.mxu0
        %v838 = vadd.f32 0.0, %v837
        %839 = vmatmul.f32.gmra.mxu0 %v800
        %v840 = vpop.f32.mrf.mxu0
        %v841 = vadd.f32 0.0, %v840
        %842 = vmatmul.f32.gmra.mxu0 %v803
        %v843 = vpop.f32.mrf.mxu0
        %v844 = vadd.f32 0.0, %v843
        %845 = vmatmul.f32.gmra.mxu0 %v806
        %v846 = vpop.f32.mrf.mxu0
        %v847 = vadd.f32 0.0, %v846
        %848 = vmatmul.f32.gmra.mxu0 %v809
        %v849 = vpop.f32.mrf.mxu0
        %v850 = vadd.f32 0.0, %v849
        %851 = vdwg.mxu0
        %v853 = vsel %vm210, %v765, 0
        %v856 = vsel %vm210, %v766, 0
        %v859 = vsel %vm210, %v767, 0
        %v862 = vsel %vm210, %v768, 0
        %v865 = vsel %vm210, %v769, 0
        %v868 = vsel %vm210, %v770, 0
        %v871 = vsel %vm210, %v771, 0
        %v874 = vsel %vm210, %v772, 0
        %876 = vmatpush.msra.mxu0 0.0
        %877 = vmatpush.msra.mxu0 0.0
        %878 = vmatpush.msra.mxu0 0.0
        %879 = vmatpush.msra.mxu0 0.0
        %880 = vmatpush.msra.mxu0 0.0
        %881 = vmatpush.msra.mxu0 0.0
        %882 = vmatpush.msra.mxu0 0.0
        %883 = vmatpush.msra.mxu0 0.0
        %884 = vmatpush.msra.mxu0 0.0
        %885 = vmatpush.msra.mxu0 0.0
        %886 = vmatpush.msra.mxu0 0.0
        %887 = vmatpush.msra.mxu0 0.0
        %888 = vmatpush.msra.mxu0 0.0
        %889 = vmatpush.msra.mxu0 0.0
        %890 = vmatpush.msra.mxu0 %v775
        %891 = vmatpush.msra.mxu0 %v774
        %892 = vmatmul.f32.gmra.mxu0 %v853
        %v893 = vpop.f32.mrf.mxu0
        %v894 = vadd.f32 %v829, %v893
        %895 = vmatmul.f32.gmra.mxu0 %v856
        %v896 = vpop.f32.mrf.mxu0
        %v897 = vadd.f32 %v832, %v896
        %898 = vmatmul.f32.gmra.mxu0 %v859
        %v899 = vpop.f32.mrf.mxu0
        %v900 = vadd.f32 %v835, %v899
        %901 = vmatmul.f32.gmra.mxu0 %v862
        %v902 = vpop.f32.mrf.mxu0
        %v903 = vadd.f32 %v838, %v902
        %904 = vmatmul.f32.gmra.mxu0 %v865
        %v905 = vpop.f32.mrf.mxu0
        %v906 = vadd.f32 %v841, %v905
        %907 = vmatmul.f32.gmra.mxu0 %v868
        %v908 = vpop.f32.mrf.mxu0
        %v909 = vadd.f32 %v844, %v908
        %910 = vmatmul.f32.gmra.mxu0 %v871
        %v911 = vpop.f32.mrf.mxu0
        %v912 = vadd.f32 %v847, %v911
        %913 = vmatmul.f32.gmra.mxu0 %v874
        %v914 = vpop.f32.mrf.mxu0
        %v915 = vadd.f32 %v850, %v914
        %916 = vdwg.mxu0
        %v917 = vld [vmem:[%s240 + $0x2] sm:$0xff]
        %v918 = vld [vmem:[%s240 + $0x12] sm:$0xff]
        %v919 = vld [vmem:[%s240 + $0x22] sm:$0xff]
        %v920 = vld [vmem:[%s240 + $0x32] sm:$0xff]
        %v921 = vld [vmem:[%s240 + $0x42] sm:$0xff]
        %v922 = vld [vmem:[%s240 + $0x52] sm:$0xff]
        %v923 = vld [vmem:[%s240 + $0x62] sm:$0xff]
        %v924 = vld [vmem:[%s240 + $0x72] sm:$0xff]
        %s925 = scalar_lea.vmem [#allocation5], 128
        %v926 = vld [vmem:[%s925] sm:$0xff]
        %v927 = vld [vmem:[%s925 + $0x8] sm:$0xff]
        %v929 = vsel %vm210, %v917, 0
        %v932 = vsel %vm210, %v918, 0
        %v935 = vsel %vm210, %v919, 0
        %v938 = vsel %vm210, %v920, 0
        %v941 = vsel %vm210, %v921, 0
        %v944 = vsel %vm210, %v922, 0
        %v947 = vsel %vm210, %v923, 0
        %v950 = vsel %vm210, %v924, 0
        %952 = vmatpush.msra.mxu0 0.0
        %953 = vmatpush.msra.mxu0 0.0
        %954 = vmatpush.msra.mxu0 0.0
        %955 = vmatpush.msra.mxu0 0.0
        %956 = vmatpush.msra.mxu0 0.0
        %957 = vmatpush.msra.mxu0 0.0
        %958 = vmatpush.msra.mxu0 0.0
        %959 = vmatpush.msra.mxu0 0.0
        %960 = vmatpush.msra.mxu0 0.0
        %961 = vmatpush.msra.mxu0 0.0
        %962 = vmatpush.msra.mxu0 0.0
        %963 = vmatpush.msra.mxu0 0.0
        %964 = vmatpush.msra.mxu0 0.0
        %965 = vmatpush.msra.mxu0 0.0
        %966 = vmatpush.msra.mxu0 %v927
        %967 = vmatpush.msra.mxu0 %v926
        %968 = vmatmul.f32.gmra.mxu0 %v929
        %v969 = vpop.f32.mrf.mxu0
        %v970 = vadd.f32 0.0, %v969
        %971 = vmatmul.f32.gmra.mxu0 %v932
        %v972 = vpop.f32.mrf.mxu0
        %v973 = vadd.f32 0.0, %v972
        %974 = vmatmul.f32.gmra.mxu0 %v935
        %v975 = vpop.f32.mrf.mxu0
        %v976 = vadd.f32 0.0, %v975
        %977 = vmatmul.f32.gmra.mxu0 %v938
        %v978 = vpop.f32.mrf.mxu0
        %v979 = vadd.f32 0.0, %v978
        %980 = vmatmul.f32.gmra.mxu0 %v941
        %v981 = vpop.f32.mrf.mxu0
        %v982 = vadd.f32 0.0, %v981
        %983 = vmatmul.f32.gmra.mxu0 %v944
        %v984 = vpop.f32.mrf.mxu0
        %v985 = vadd.f32 0.0, %v984
        %986 = vmatmul.f32.gmra.mxu0 %v947
        %v987 = vpop.f32.mrf.mxu0
        %v988 = vadd.f32 0.0, %v987
        %989 = vmatmul.f32.gmra.mxu0 %v950
        %v990 = vpop.f32.mrf.mxu0
        %v991 = vadd.f32 0.0, %v990
        %992 = vdwg.mxu0
        %v993 = vadd.f32 %v894, %v970
        %v994 = vadd.f32 %v897, %v973
        %v995 = vadd.f32 %v900, %v976
        %v996 = vadd.f32 %v903, %v979
        %v997 = vadd.f32 %v906, %v982
        %v998 = vadd.f32 %v909, %v985
        %v999 = vadd.f32 %v912, %v988
        %v1000 = vadd.f32 %v915, %v991
        %s1001 = scalar_lea.vmem [#allocation2], 32
        %v1002 = vld [vmem:[%s1001] sm:$0xff]
        %v1003 = vld [vmem:[%s1001 + $0x10] sm:$0xff]
        %v1004 = vld [vmem:[%s1001 + $0x20] sm:$0xff]
        %v1005 = vld [vmem:[%s1001 + $0x30] sm:$0xff]
        %v1006 = vld [vmem:[%s1001 + $0x40] sm:$0xff]
        %v1007 = vld [vmem:[%s1001 + $0x50] sm:$0xff]
        %v1008 = vld [vmem:[%s1001 + $0x60] sm:$0xff]
        %v1009 = vld [vmem:[%s1001 + $0x70] sm:$0xff]
        %s1010 = scalar_lea.vmem [#allocation5], 144
        %v1011 = vld [vmem:[%s1010] sm:$0xff]
        %v1012 = vld [vmem:[%s1010 + $0x8] sm:$0xff]
        %v1014 = vsel %vm210, %v1002, 0
        %v1017 = vsel %vm210, %v1003, 0
        %v1020 = vsel %vm210, %v1004, 0
        %v1023 = vsel %vm210, %v1005, 0
        %v1026 = vsel %vm210, %v1006, 0
        %v1029 = vsel %vm210, %v1007, 0
        %v1032 = vsel %vm210, %v1008, 0
        %v1035 = vsel %vm210, %v1009, 0
        %1037 = vmatpush.msra.mxu0 0.0
        %1038 = vmatpush.msra.mxu0 0.0
        %1039 = vmatpush.msra.mxu0 0.0
        %1040 = vmatpush.msra.mxu0 0.0
        %1041 = vmatpush.msra.mxu0 0.0
        %1042 = vmatpush.msra.mxu0 0.0
        %1043 = vmatpush.msra.mxu0 0.0
        %1044 = vmatpush.msra.mxu0 0.0
        %1045 = vmatpush.msra.mxu0 0.0
        %1046 = vmatpush.msra.mxu0 0.0
        %1047 = vmatpush.msra.mxu0 0.0
        %1048 = vmatpush.msra.mxu0 0.0
        %1049 = vmatpush.msra.mxu0 0.0
        %1050 = vmatpush.msra.mxu0 0.0
        %1051 = vmatpush.msra.mxu0 %v1012
        %1052 = vmatpush.msra.mxu0 %v1011
        %1053 = vmatmul.f32.gmra.mxu0 %v1014
        %v1054 = vpop.f32.mrf.mxu0
        %v1055 = vadd.f32 0.0, %v1054
        %1056 = vmatmul.f32.gmra.mxu0 %v1017
        %v1057 = vpop.f32.mrf.mxu0
        %v1058 = vadd.f32 0.0, %v1057
        %1059 = vmatmul.f32.gmra.mxu0 %v1020
        %v1060 = vpop.f32.mrf.mxu0
        %v1061 = vadd.f32 0.0, %v1060
        %1062 = vmatmul.f32.gmra.mxu0 %v1023
        %v1063 = vpop.f32.mrf.mxu0
        %v1064 = vadd.f32 0.0, %v1063
        %1065 = vmatmul.f32.gmra.mxu0 %v1026
        %v1066 = vpop.f32.mrf.mxu0
        %v1067 = vadd.f32 0.0, %v1066
        %1068 = vmatmul.f32.gmra.mxu0 %v1029
        %v1069 = vpop.f32.mrf.mxu0
        %v1070 = vadd.f32 0.0, %v1069
        %1071 = vmatmul.f32.gmra.mxu0 %v1032
        %v1072 = vpop.f32.mrf.mxu0
        %v1073 = vadd.f32 0.0, %v1072
        %1074 = vmatmul.f32.gmra.mxu0 %v1035
        %v1075 = vpop.f32.mrf.mxu0
        %v1076 = vadd.f32 0.0, %v1075
        %1077 = vdwg.mxu0
        %v1078 = vadd.f32 %v993, %v1055
        %v1079 = vadd.f32 %v994, %v1058
        %v1080 = vadd.f32 %v995, %v1061
        %v1081 = vadd.f32 %v996, %v1064
        %v1082 = vadd.f32 %v997, %v1067
        %v1083 = vadd.f32 %v998, %v1070
        %v1084 = vadd.f32 %v999, %v1073
        %v1085 = vadd.f32 %v1000, %v1076
        %v1086 = vld [vmem:[%s1001 + $0x1] sm:$0xff]
        %v1087 = vld [vmem:[%s1001 + $0x11] sm:$0xff]
        %v1088 = vld [vmem:[%s1001 + $0x21] sm:$0xff]
        %v1089 = vld [vmem:[%s1001 + $0x31] sm:$0xff]
        %v1090 = vld [vmem:[%s1001 + $0x41] sm:$0xff]
        %v1091 = vld [vmem:[%s1001 + $0x51] sm:$0xff]
        %v1092 = vld [vmem:[%s1001 + $0x61] sm:$0xff]
        %v1093 = vld [vmem:[%s1001 + $0x71] sm:$0xff]
        %s1094 = scalar_lea.vmem [#allocation5], 160
        %v1095 = vld [vmem:[%s1094] sm:$0xff]
        %v1096 = vld [vmem:[%s1094 + $0x8] sm:$0xff]
        %v1098 = vsel %vm210, %v1086, 0
        %v1101 = vsel %vm210, %v1087, 0
        %v1104 = vsel %vm210, %v1088, 0
        %v1107 = vsel %vm210, %v1089, 0
        %v1110 = vsel %vm210, %v1090, 0
        %v1113 = vsel %vm210, %v1091, 0
        %v1116 = vsel %vm210, %v1092, 0
        %v1119 = vsel %vm210, %v1093, 0
        %1121 = vmatpush.msra.mxu0 0.0
        %1122 = vmatpush.msra.mxu0 0.0
        %1123 = vmatpush.msra.mxu0 0.0
        %1124 = vmatpush.msra.mxu0 0.0
        %1125 = vmatpush.msra.mxu0 0.0
        %1126 = vmatpush.msra.mxu0 0.0
        %1127 = vmatpush.msra.mxu0 0.0
        %1128 = vmatpush.msra.mxu0 0.0
        %1129 = vmatpush.msra.mxu0 0.0
        %1130 = vmatpush.msra.mxu0 0.0
        %1131 = vmatpush.msra.mxu0 0.0
        %1132 = vmatpush.msra.mxu0 0.0
        %1133 = vmatpush.msra.mxu0 0.0
        %1134 = vmatpush.msra.mxu0 0.0
        %1135 = vmatpush.msra.mxu0 %v1096
        %1136 = vmatpush.msra.mxu0 %v1095
        %1137 = vmatmul.f32.gmra.mxu0 %v1098
        %v1138 = vpop.f32.mrf.mxu0
        %v1139 = vadd.f32 0.0, %v1138
        %1140 = vmatmul.f32.gmra.mxu0 %v1101
        %v1141 = vpop.f32.mrf.mxu0
        %v1142 = vadd.f32 0.0, %v1141
        %1143 = vmatmul.f32.gmra.mxu0 %v1104
        %v1144 = vpop.f32.mrf.mxu0
        %v1145 = vadd.f32 0.0, %v1144
        %1146 = vmatmul.f32.gmra.mxu0 %v1107
        %v1147 = vpop.f32.mrf.mxu0
        %v1148 = vadd.f32 0.0, %v1147
        %1149 = vmatmul.f32.gmra.mxu0 %v1110
        %v1150 = vpop.f32.mrf.mxu0
        %v1151 = vadd.f32 0.0, %v1150
        %1152 = vmatmul.f32.gmra.mxu0 %v1113
        %v1153 = vpop.f32.mrf.mxu0
        %v1154 = vadd.f32 0.0, %v1153
        %1155 = vmatmul.f32.gmra.mxu0 %v1116
        %v1156 = vpop.f32.mrf.mxu0
        %v1157 = vadd.f32 0.0, %v1156
        %1158 = vmatmul.f32.gmra.mxu0 %v1119
        %v1159 = vpop.f32.mrf.mxu0
        %v1160 = vadd.f32 0.0, %v1159
        %1161 = vdwg.mxu0
        %v1162 = vadd.f32 %v1078, %v1139
        %v1163 = vadd.f32 %v1079, %v1142
        %v1164 = vadd.f32 %v1080, %v1145
        %v1165 = vadd.f32 %v1081, %v1148
        %v1166 = vadd.f32 %v1082, %v1151
        %v1167 = vadd.f32 %v1083, %v1154
        %v1168 = vadd.f32 %v1084, %v1157
        %v1169 = vadd.f32 %v1085, %v1160
        %v1170 = vld [vmem:[%s1001 + $0x2] sm:$0xff]
        %v1171 = vld [vmem:[%s1001 + $0x12] sm:$0xff]
        %v1172 = vld [vmem:[%s1001 + $0x22] sm:$0xff]
        %v1173 = vld [vmem:[%s1001 + $0x32] sm:$0xff]
        %v1174 = vld [vmem:[%s1001 + $0x42] sm:$0xff]
        %v1175 = vld [vmem:[%s1001 + $0x52] sm:$0xff]
        %v1176 = vld [vmem:[%s1001 + $0x62] sm:$0xff]
        %v1177 = vld [vmem:[%s1001 + $0x72] sm:$0xff]
        %s1178 = scalar_lea.vmem [#allocation5], 176
        %v1179 = vld [vmem:[%s1178] sm:$0xff]
        %v1180 = vld [vmem:[%s1178 + $0x8] sm:$0xff]
        %v1182 = vsel %vm210, %v1170, 0
        %v1185 = vsel %vm210, %v1171, 0
        %v1188 = vsel %vm210, %v1172, 0
        %v1191 = vsel %vm210, %v1173, 0
        %v1194 = vsel %vm210, %v1174, 0
        %v1197 = vsel %vm210, %v1175, 0
        %v1200 = vsel %vm210, %v1176, 0
        %v1203 = vsel %vm210, %v1177, 0
        %1205 = vmatpush.msra.mxu0 0.0
        %1206 = vmatpush.msra.mxu0 0.0
        %1207 = vmatpush.msra.mxu0 0.0
        %1208 = vmatpush.msra.mxu0 0.0
        %1209 = vmatpush.msra.mxu0 0.0
        %1210 = vmatpush.msra.mxu0 0.0
        %1211 = vmatpush.msra.mxu0 0.0
        %1212 = vmatpush.msra.mxu0 0.0
        %1213 = vmatpush.msra.mxu0 0.0
        %1214 = vmatpush.msra.mxu0 0.0
        %1215 = vmatpush.msra.mxu0 0.0
        %1216 = vmatpush.msra.mxu0 0.0
        %1217 = vmatpush.msra.mxu0 0.0
        %1218 = vmatpush.msra.mxu0 0.0
        %1219 = vmatpush.msra.mxu0 %v1180
        %1220 = vmatpush.msra.mxu0 %v1179
        %1221 = vmatmul.f32.gmra.mxu0 %v1182
        %v1222 = vpop.f32.mrf.mxu0
        %v1223 = vadd.f32 0.0, %v1222
        %1224 = vmatmul.f32.gmra.mxu0 %v1185
        %v1225 = vpop.f32.mrf.mxu0
        %v1226 = vadd.f32 0.0, %v1225
        %1227 = vmatmul.f32.gmra.mxu0 %v1188
        %v1228 = vpop.f32.mrf.mxu0
        %v1229 = vadd.f32 0.0, %v1228
        %1230 = vmatmul.f32.gmra.mxu0 %v1191
        %v1231 = vpop.f32.mrf.mxu0
        %v1232 = vadd.f32 0.0, %v1231
        %1233 = vmatmul.f32.gmra.mxu0 %v1194
        %v1234 = vpop.f32.mrf.mxu0
        %v1235 = vadd.f32 0.0, %v1234
        %1236 = vmatmul.f32.gmra.mxu0 %v1197
        %v1237 = vpop.f32.mrf.mxu0
        %v1238 = vadd.f32 0.0, %v1237
        %1239 = vmatmul.f32.gmra.mxu0 %v1200
        %v1240 = vpop.f32.mrf.mxu0
        %v1241 = vadd.f32 0.0, %v1240
        %1242 = vmatmul.f32.gmra.mxu0 %v1203
        %v1243 = vpop.f32.mrf.mxu0
        %v1244 = vadd.f32 0.0, %v1243
        %1245 = vdwg.mxu0
        %v1246 = vadd.f32 %v1162, %v1223
        %v1247 = vadd.f32 %v1163, %v1226
        %v1248 = vadd.f32 %v1164, %v1229
        %v1249 = vadd.f32 %v1165, %v1232
        %v1250 = vadd.f32 %v1166, %v1235
        %v1251 = vadd.f32 %v1167, %v1238
        %v1252 = vadd.f32 %v1168, %v1241
        %v1253 = vadd.f32 %v1169, %v1244
        %v1254 = vadd.f32 %v1246, %v738
        %v1255 = vadd.f32 %v1247, %v738
        %v1256 = vadd.f32 %v1248, %v738
        %v1257 = vadd.f32 %v1249, %v738
        %v1258 = vadd.f32 %v1250, %v738
        %v1259 = vadd.f32 %v1251, %v738
        %v1260 = vadd.f32 %v1252, %v738
        %v1261 = vadd.f32 %v1253, %v738
        %v1262 = vmax.f32 %v1254, 0.0
        %v1263 = vmax.f32 %v1255, 0.0
        %v1264 = vmax.f32 %v1256, 0.0
        %v1265 = vmax.f32 %v1257, 0.0
        %v1266 = vmax.f32 %v1258, 0.0
        %v1267 = vmax.f32 %v1259, 0.0
        %v1268 = vmax.f32 %v1260, 0.0
        %v1269 = vmax.f32 %v1261, 0.0
        %s1270 = scalar_lea.vmem %s209, 8
        %1271 = vst.msk [vmem:[%s1270] sm:$0xff] %vm756, %v1262
        %1272 = vst.msk [vmem:[%s1270 + $0x10] sm:$0xff] %vm756, %v1263
        %1273 = vst.msk [vmem:[%s1270 + $0x20] sm:$0xff] %vm756, %v1264
        %1274 = vst.msk [vmem:[%s1270 + $0x30] sm:$0xff] %vm756, %v1265
        %1275 = vst.msk [vmem:[%s1270 + $0x40] sm:$0xff] %vm756, %v1266
        %1276 = vst.msk [vmem:[%s1270 + $0x50] sm:$0xff] %vm756, %v1267
        %1277 = vst.msk [vmem:[%s1270 + $0x60] sm:$0xff] %vm756, %v1268
        %1278 = vst.msk [vmem:[%s1270 + $0x70] sm:$0xff] %vm756, %v1269
        %p1279 = scmp.lt.s32.totalorder %s18, 1
        %s1280 = scalar_select %p1279, %s18, 1
        %s1281 = smul.addr %s1280, 16
        %s1282 = smul.addr %s1281, 8
        %s1283 = scalar_lea.vmem %s3, %s1282
        // Predicated region
        $region41: #{_lambda_.1} parent=31 // pred_check
          %p1284 = pneg %p104
        $region42: #{_lambda_.1} parent=31 // pred_check_branch
          %1286 = sbr.rel (%p1284) target = $region44
        $region43: #{_lambda_.1} parent=31 // pred_region
          _
        $region44: #{_lambda_.1} parent=31 // pred_fallthru
          _
      $region32: #{_lambda_.1} parent=5 // pred_fallthru
        _
      %p1287 = scmp.le.s32.totalorder 2, %s13
      // Predicated region
      $region45: #{_lambda_.1} parent=5 // pred_check
        %p1288 = pneg %p1287
      $region46: #{_lambda_.1} parent=5 // pred_check_branch
        %1290 = sbr.rel (%p1288) target = $region48
      $region47: #{_lambda_.1} parent=5 // pred_region
        %s1291 = ssub.s32 %s13, 2
        // Predicated region
        $region49: #{_lambda_.1} parent=47 // pred_check
          %p1292 = pneg %p110
        $region50: #{_lambda_.1} parent=47 // pred_check_branch
          %1294 = sbr.rel (%p1292) target = $region52
        $region51: #{_lambda_.1} parent=47 // pred_region
          %p1295 = scmp.lt.s32.totalorder %s19, 1
          %s1296 = scalar_select %p1295, %s19, 1
          %s1297 = smul.addr %s1296, 16
          %s1298 = smul.addr %s1297, 8
          %s1299 = scalar_lea.vmem %s3, %s1298
        $region52: #{_lambda_.1} parent=47 // pred_fallthru
          _
      $region48: #{_lambda_.1} parent=5 // pred_fallthru
        _
    $region6: #{_lambda_.1} parent=1 // loop_footer
      %s17 = sadd.s32 1, %s13
    $region7: #{_lambda_.1} parent=1 // loop_footer_branch
      %12 = sbr.rel target = $region3
    $region8: #{_lambda_.1} parent=1 // loop_exit
      _
    %1300 = vsyncpa [#allocation4], 1
    %s1301 = scalar_lea.sflag [#allocation4], 1
    %1302 = vsyncpa %s1301, 1
    %1303 = vsyncpa [#allocation6], 1

</llo_original>
